<compile_context>
chip_gen: v6e
topology: v6e:2x2x1
jax: 0.10.0
libtpu: 0.0.40
codegen_flags: <defaults>
</compile_context>

<pallas_src>
import math
import functools

import jax
import jax.numpy as jnp
import numpy as np
from jax import lax
from jax.experimental import pallas as pl
from jax.experimental.pallas import tpu as pltpu


def _vit_attn_kernel(x_ref, wqkv_ref, bqkv_ref, wo_ref, bo_ref, o_ref, ctx_ref,
                     *, heads_per_chunk, head_size, seq_real, num_chunks):
    """One (head-chunk, batch) grid point: QKV proj for this chunk's heads,
    per-head attention, and the chunk-partial output projection."""
    S = x_ref.shape[1]                        # padded sequence length
    Dc = heads_per_chunk * head_size          # model-dim slice owned by this chunk

    x = x_ref[0]                              # (S, D) bf16

    # Fused QKV projection (bf16 MXU, f32 accumulation). wqkv/bqkv are already
    # host-permuted to [Q_chunk | K_chunk | V_chunk] with 1/sqrt(hd) folded
    # into the Q columns.
    qkv = jnp.dot(x, wqkv_ref[...], preferred_element_type=jnp.float32)
    qkv = qkv + bqkv_ref[0]                   # (S, 3*Dc) f32
    qkv_bf = qkv.astype(jnp.bfloat16)

    # Mask padded key columns (only when S was padded). Scores stay f32, so the
    # -1e30 fill is safe; exp underflows to exactly 0 for masked columns.
    if seq_real != S:
        key_mask = lax.broadcasted_iota(jnp.int32, (S, S), 1) < seq_real
    else:
        key_mask = None

    # NOTE(perf): fully-unrolled head loop is fine for small head counts; for
    # heads_per_chunk >= 12 with observed vreg spills, switch to lax.fori_loop
    # over 128-lane-aligned head pairs (also fixes odd-head 64-lane slices).
    for h in range(heads_per_chunk):
        off = h * head_size
        q = qkv_bf[:, off:off + head_size]                       # (S, hd)
        k = qkv_bf[:, Dc + off:Dc + off + head_size]             # (S, hd)
        v = qkv_bf[:, 2 * Dc + off:2 * Dc + off + head_size]     # (S, hd)

        # q @ k^T without materializing a transpose: contract the hd axis.
        s = lax.dot_general(q, k, (((1,), (1,)), ((), ())),
                            preferred_element_type=jnp.float32)  # (S, S) f32
        if key_mask is not None:
            s = jnp.where(key_mask, s, -1e30)

        # Softmax numerator in f32; exp(s - m) is in (0, 1] so casting the
        # UNNORMALIZED probabilities to bf16 for the MXU is safe.
        # NOTE(perf, v6e/v7x): if the EUP binds at large S, the exp could run
        # on bf16 inputs; keep f32 on v5e (no bf16 EUP).
        m = jnp.max(s, axis=-1, keepdims=True)
        p = jnp.exp(s - m)
        denom = jnp.sum(p, axis=-1, keepdims=True)

        # TODO(synk): attention_dropout / dropout are identity in eval mode;
        # training-mode dropout is not implemented here.
        ctx_h = jnp.dot(p.astype(jnp.bfloat16), v,
                        preferred_element_type=jnp.float32)      # (S, hd) f32

        # Normalize AFTER P@V: touches S*hd elements instead of S*S; the
        # reciprocal runs on the EUP slot.
        inv = pl.reciprocal(denom, approx=True)                  # (S, 1) f32
        ctx_ref[:, off:off + head_size] = (ctx_h * inv).astype(jnp.bfloat16)

    # "Concat heads -> dense" as a single deep matmul (K = Dc) instead of
    # per-head K=head_size accumulation passes. The output bias is split
    # evenly across head chunks so the chunk partials sum to exactly one bias.
    acc = jnp.dot(ctx_ref[...], wo_ref[...],
                  preferred_element_type=jnp.float32)            # (S, D) f32
    acc = acc + bo_ref[0] * (1.0 / num_chunks)
    o_ref[0, 0] = acc.astype(o_ref.dtype)


def prepare_vit_attention_params(wqkv, bqkv, wo, bo, *, num_heads, head_chunks=1):
    """One-time host-side parameter prep:
      * permute W_qkv / b_qkv columns from torch's per-head-interleaved layout
        [h0:(q,k,v), h1:(q,k,v), ...] to per-chunk grouped blocks
        [chunk0: Q|K|V, chunk1: Q|K|V, ...] (chunk0 == all heads when
        head_chunks == 1),
      * fold the 1/sqrt(head_size) attention scale into the Q columns,
      * cast matmul operands to bf16 (biases stay f32).
    W_out rows stay in head-concat order (chunk c owns rows [c*Dc:(c+1)*Dc])."""
    D = wqkv.shape[0]
    hd = D // num_heads
    C = head_chunks
    hc = num_heads // C
    # torch column layout index [head, part(q/k/v), d] -> new [chunk, part, head, d]
    perm = (np.arange(3 * D).reshape(num_heads, 3, hd)
            .reshape(C, hc, 3, hd).transpose(0, 2, 1, 3).reshape(-1))
    scale = np.ones((C, 3, hc, hd), np.float32)
    scale[:, 0] = 1.0 / math.sqrt(hd)        # fold attention scale into Q cols
    scale = scale.reshape(-1)
    wqkv_p = (wqkv[:, perm] * scale[None, :]).astype(jnp.bfloat16)
    bqkv_p = (bqkv[:, perm] * scale[None, :]).astype(jnp.float32)
    wo_p = wo.astype(jnp.bfloat16)
    bo_p = bo.astype(jnp.float32)
    return wqkv_p, bqkv_p, wo_p, bo_p


def vit_self_attention(x, wqkv, bqkv, wo, bo, *, num_heads, head_chunks=1):
    """x: (B, S, D); wqkv: (D, 3D); bqkv: (1, 3D); wo: (D, D); bo: (1, D).

    head_chunks adds a second 'parallel' grid axis over groups of heads so
    both v7x TensorCores get work when B is small (use 2 on v7x for B == 1);
    leave 1 on single-TensorCore v5e/v6e — it keeps weights resident and
    avoids the partial-output combine."""
    B, S, D = x.shape
    C = head_chunks
    assert D % num_heads == 0 and num_heads % C == 0
    head_size = D // num_heads
    hc = num_heads // C
    Dc = hc * head_size

    wqkv_p, bqkv_p, wo_p, bo_p = prepare_vit_attention_params(
        wqkv, bqkv, wo, bo, num_heads=num_heads, head_chunks=C)

    # Pad S to a multiple of 16 (bf16 packs 16 rows per vreg on the sublane
    # axis); padded key columns are masked in-kernel, padded rows sliced off.
    S_pad = ((S + 15) // 16) * 16
    x_in = x.astype(jnp.bfloat16)
    if S_pad != S:
        x_in = jnp.pad(x_in, ((0, 0), (0, S_pad - S), (0, 0)))

    kernel = functools.partial(_vit_attn_kernel, heads_per_chunk=hc,
                               head_size=head_size, seq_real=S, num_chunks=C)

    # Weight/bias blocks are constant along the inner batch axis (and fully
    # constant when C == 1): single-buffer them to reclaim VMEM (matters most
    # under v7x's 64 MiB) instead of the default double buffering.
    wb = pl.Buffered(1)

    # NOTE(perf, v5e): when the surrounding model runs bf16, emit the output
    # in bf16 to halve HBM writeback; kept at x.dtype here to match the module.
    out = pl.pallas_call(
        kernel,
        out_shape=jax.ShapeDtypeStruct((B, C, S_pad, D), x.dtype),
        grid_spec=pltpu.PrefetchScalarGridSpec(
            num_scalar_prefetch=0,
            # Chunk axis OUTER so weights are not re-streamed for every batch.
            grid=(C, B),
            in_specs=[
                pl.BlockSpec((1, S_pad, D), lambda c, b: (b, 0, 0)),   # x
                pl.BlockSpec((D, 3 * Dc), lambda c, b: (0, c),
                             pipeline_mode=wb),                        # W_qkv
                pl.BlockSpec((1, 3 * Dc), lambda c, b: (0, c),
                             pipeline_mode=wb),                        # b_qkv
                pl.BlockSpec((Dc, D), lambda c, b: (c, 0),
                             pipeline_mode=wb),                        # W_out rows
                pl.BlockSpec((1, D), lambda c, b: (0, 0),
                             pipeline_mode=wb),                        # b_out
            ],
            out_specs=pl.BlockSpec((1, 1, S_pad, D), lambda c, b: (b, c, 0, 0)),
            scratch_shapes=[pltpu.VMEM((S_pad, Dc), jnp.bfloat16)],    # ctx (heads concat)
        ),
        compiler_params=pltpu.CompilerParams(
            dimension_semantics=("parallel", "parallel"),
            vmem_limit_bytes=32 * 1024 * 1024),
    )(x_in, wqkv_p, bqkv_p, wo_p, bo_p)

    # Combine chunk partials (each already carries its 1/C share of the bias).
    out = out[:, 0] if C == 1 else jnp.sum(out, axis=1)
    if S_pad != S:
        out = out[:, :S, :]
    return out


def reference(x, wqkv, bqkv, wo, bo, *, num_heads):
    """Pure-JAX f32 mirror of the PyTorch forward (eval mode), original layout."""
    B, S, D = x.shape
    hd = D // num_heads
    qkv = x @ wqkv + bqkv[0]                                 # (B, S, 3D)
    qkv = qkv.reshape(B, S, num_heads, 3 * hd).transpose(0, 2, 1, 3)
    q, k, v = jnp.split(qkv, 3, axis=-1)
    s = jnp.einsum('bhqd,bhkd->bhqk', q, k) / math.sqrt(hd)
    p = jax.nn.softmax(s, axis=-1)
    ctx = jnp.einsum('bhqk,bhkd->bhqd', p, v)
    ctx = ctx.transpose(0, 2, 1, 3).reshape(B, S, D)
    return ctx @ wo + bo[0]


if __name__ == "__main__":
    # Small but representative ViT shape: head_size=64 keeps head slices and
    # (with head_chunks=2) the chunked W_qkv/b_qkv blocks 128-lane aligned.
    B, S, D, H = 2, 20, 256, 4          # dim=256, num_heads=4, head_size=64

    key = jax.random.PRNGKey(0)
    kx, kwq, kbq, kwo, kbo = jax.random.split(key, 5)

    x = jax.random.normal(kx, (B, S, D), dtype=jnp.float32)
    # Torch-layout synthetic parameters: Linear(D, 3D) and Linear(D, D),
    # stored as (in, out) so the math is x @ W + b.
    wqkv = jax.random.normal(kwq, (D, 3 * D), dtype=jnp.float32) * (1.0 / math.sqrt(D))
    bqkv = jax.random.normal(kbq, (1, 3 * D), dtype=jnp.float32) * 0.02
    wo = jax.random.normal(kwo, (D, D), dtype=jnp.float32) * (1.0 / math.sqrt(D))
    bo = jax.random.normal(kbo, (1, D), dtype=jnp.float32) * 0.02

    ref = reference(x, wqkv, bqkv, wo, bo, num_heads=H)

    # Tolerance accounts for bf16 MXU operands across K=256-deep contractions
    # plus the approx reciprocal, vs. the pure-f32 reference.
    tol = dict(rtol=5e-2, atol=1e-1)

    # Default single-chunk path (v5e/v6e, or v7x with enough batch).
    out1 = jax.block_until_ready(
        vit_self_attention(x, wqkv, bqkv, wo, bo, num_heads=H, head_chunks=1))
    np.testing.assert_allclose(np.asarray(out1), np.asarray(ref), **tol)

    # Two head chunks: second parallel grid axis feeding both v7x TensorCores.
    out2 = jax.block_until_ready(
        vit_self_attention(x, wqkv, bqkv, wo, bo, num_heads=H, head_chunks=2))
    np.testing.assert_allclose(np.asarray(out2), np.asarray(ref), **tol)

    print("KERNEL_OK")
</pallas_src>

<mosaic_0001>
module attributes {stable_mosaic.version = 11 : i64} {
  func.func @_vit_attn_kernel(%arg0: i32, %arg1: i32, %arg2: memref<1x32x256xbf16, #tpu.memory_space<vmem>>, %arg3: memref<256x768xbf16, #tpu.memory_space<vmem>>, %arg4: memref<1x768xf32, #tpu.memory_space<vmem>>, %arg5: memref<256x256xbf16, #tpu.memory_space<vmem>>, %arg6: memref<1x256xf32, #tpu.memory_space<vmem>>, %arg7: memref<1x1x32x256xf32, #tpu.memory_space<vmem>>, %arg8: memref<32x256xbf16, #tpu.memory_space<vmem>>) attributes {dimension_semantics = [#tpu.dimension_semantics<parallel>, #tpu.dimension_semantics<parallel>], iteration_bounds = array<i64: 1, 2>, scalar_prefetch = 0 : i64, scratch_operands = 1 : i64, tpu.core_type = #tpu.core_type<tc>, window_params = [{transform_indices = @transform_0, window_bounds = array<i64: 1, 32, 256>}, {pipeline_mode = #tpu.pipeline_mode<synchronous>, transform_indices = @transform_1, window_bounds = array<i64: 256, 768>}, {pipeline_mode = #tpu.pipeline_mode<synchronous>, transform_indices = @transform_2, window_bounds = array<i64: 1, 768>}, {pipeline_mode = #tpu.pipeline_mode<synchronous>, transform_indices = @transform_3, window_bounds = array<i64: 256, 256>}, {pipeline_mode = #tpu.pipeline_mode<synchronous>, transform_indices = @transform_4, window_bounds = array<i64: 1, 256>}, {transform_indices = @transform_5, window_bounds = array<i64: 1, 1, 32, 256>}]} {
    %c0 = arith.constant 0 : index
    %c0_0 = arith.constant 0 : index
    %c0_1 = arith.constant 0 : index
    %0 = vector.load %arg2[%c0, %c0_0, %c0_1] : memref<1x32x256xbf16, #tpu.memory_space<vmem>>, vector<1x32x256xbf16>
    %1 = vector.shape_cast %0 : vector<1x32x256xbf16> to vector<32x256xbf16>
    %c0_2 = arith.constant 0 : index
    %c0_3 = arith.constant 0 : index
    %2 = vector.load %arg3[%c0_2, %c0_3] : memref<256x768xbf16, #tpu.memory_space<vmem>>, vector<256x768xbf16>
    %cst = arith.constant dense<0.000000e+00> : vector<32x768xf32>
    %3 = tpu.matmul %1, %2, %cst {dimension_numbers = #tpu.dot_dimension_numbers<[1], [0], [0], [1], [0, 0, 1, 1], [], []>} : vector<32x256xbf16>, vector<256x768xbf16>, vector<32x768xf32> -> vector<32x768xf32>
    %c0_4 = arith.constant 0 : index
    %c0_5 = arith.constant 0 : index
    %4 = vector.load %arg4[%c0_4, %c0_5] : memref<1x768xf32, #tpu.memory_space<vmem>>, vector<1x768xf32>
    %5 = vector.shape_cast %4 : vector<1x768xf32> to vector<768xf32>
    %6 = vector.shape_cast %5 : vector<768xf32> to vector<1x768xf32>
    %7 = vector.broadcast %6 : vector<1x768xf32> to vector<32x768xf32>
    %8 = arith.addf %3, %7 : vector<32x768xf32>
    %9 = arith.truncf %8 : vector<32x768xf32> to vector<32x768xbf16>
    %10 = tpu.iota {dimensions = array<i32: 1>} : vector<32x32xi32>
    %c20_i32 = arith.constant 20 : i32
    %11 = vector.broadcast %c20_i32 : i32 to vector<32x32xi32>
    %12 = arith.cmpi slt, %10, %11 : vector<32x32xi32>
    %13 = vector.extract_strided_slice %9 {offsets = [0, 0], sizes = [32, 64], strides = [1, 1]} : vector<32x768xbf16> to vector<32x64xbf16>
    %14 = vector.extract_strided_slice %9 {offsets = [0, 256], sizes = [32, 64], strides = [1, 1]} : vector<32x768xbf16> to vector<32x64xbf16>
    %15 = vector.extract_strided_slice %9 {offsets = [0, 512], sizes = [32, 64], strides = [1, 1]} : vector<32x768xbf16> to vector<32x64xbf16>
    %cst_6 = arith.constant dense<0.000000e+00> : vector<32x32xf32>
    %16 = tpu.matmul %13, %14, %cst_6 {dimension_numbers = #tpu.dot_dimension_numbers<[1], [1], [0], [0], [0, 0, 1, 0], [], []>} : vector<32x64xbf16>, vector<32x64xbf16>, vector<32x32xf32> -> vector<32x32xf32>
    %cst_7 = arith.constant -1.000000e+30 : f32
    %17 = vector.broadcast %cst_7 : f32 to vector<32x32xf32>
    %18 = arith.select %12, %16, %17 : vector<32x32xi1>, vector<32x32xf32>
    %cst_8 = arith.constant dense<0xFF800000> : vector<32xf32>
    %19 = vector.multi_reduction <maximumf>, %18, %cst_8 [1] : vector<32x32xf32> to vector<32xf32>
    %20 = vector.shape_cast %19 : vector<32xf32> to vector<32x1xf32>
    %21 = vector.broadcast %20 : vector<32x1xf32> to vector<32x32xf32>
    %22 = arith.subf %18, %21 : vector<32x32xf32>
    %23 = math.exp %22 : vector<32x32xf32>
    %cst_9 = arith.constant dense<0.000000e+00> : vector<32xf32>
    %24 = vector.multi_reduction <add>, %23, %cst_9 [1] : vector<32x32xf32> to vector<32xf32>
    %25 = vector.shape_cast %24 : vector<32xf32> to vector<32x1xf32>
    %26 = arith.truncf %23 : vector<32x32xf32> to vector<32x32xbf16>
    %cst_10 = arith.constant dense<0.000000e+00> : vector<32x64xf32>
    %27 = tpu.matmul %26, %15, %cst_10 {dimension_numbers = #tpu.dot_dimension_numbers<[1], [0], [0], [1], [0, 0, 1, 1], [], []>} : vector<32x32xbf16>, vector<32x64xbf16>, vector<32x64xf32> -> vector<32x64xf32>
    %28 = tpu.reciprocal %25 {approx = true} : vector<32x1xf32> -> vector<32x1xf32>
    %29 = vector.broadcast %28 : vector<32x1xf32> to vector<32x64xf32>
    %30 = arith.mulf %27, %29 : vector<32x64xf32>
    %31 = arith.truncf %30 : vector<32x64xf32> to vector<32x64xbf16>
    %c0_11 = arith.constant 0 : index
    %c0_12 = arith.constant 0 : index
    %32 = vector.load %arg8[%c0_11, %c0_12] : memref<32x256xbf16, #tpu.memory_space<vmem>>, vector<32x64xbf16>
    tpu.vector_store %arg8[%c0_11, %c0_12], %31 {strides = array<i32>} : memref<32x256xbf16, #tpu.memory_space<vmem>>, vector<32x64xbf16>,
    %33 = vector.extract_strided_slice %9 {offsets = [0, 64], sizes = [32, 64], strides = [1, 1]} : vector<32x768xbf16> to vector<32x64xbf16>
    %34 = vector.extract_strided_slice %9 {offsets = [0, 320], sizes = [32, 64], strides = [1, 1]} : vector<32x768xbf16> to vector<32x64xbf16>
    %35 = vector.extract_strided_slice %9 {offsets = [0, 576], sizes = [32, 64], strides = [1, 1]} : vector<32x768xbf16> to vector<32x64xbf16>
    %cst_13 = arith.constant dense<0.000000e+00> : vector<32x32xf32>
    %36 = tpu.matmul %33, %34, %cst_13 {dimension_numbers = #tpu.dot_dimension_numbers<[1], [1], [0], [0], [0, 0, 1, 0], [], []>} : vector<32x64xbf16>, vector<32x64xbf16>, vector<32x32xf32> -> vector<32x32xf32>
    %cst_14 = arith.constant -1.000000e+30 : f32
    %37 = vector.broadcast %cst_14 : f32 to vector<32x32xf32>
    %38 = arith.select %12, %36, %37 : vector<32x32xi1>, vector<32x32xf32>
    %cst_15 = arith.constant dense<0xFF800000> : vector<32xf32>
    %39 = vector.multi_reduction <maximumf>, %38, %cst_15 [1] : vector<32x32xf32> to vector<32xf32>
    %40 = vector.shape_cast %39 : vector<32xf32> to vector<32x1xf32>
    %41 = vector.broadcast %40 : vector<32x1xf32> to vector<32x32xf32>
    %42 = arith.subf %38, %41 : vector<32x32xf32>
    %43 = math.exp %42 : vector<32x32xf32>
    %cst_16 = arith.constant dense<0.000000e+00> : vector<32xf32>
    %44 = vector.multi_reduction <add>, %43, %cst_16 [1] : vector<32x32xf32> to vector<32xf32>
    %45 = vector.shape_cast %44 : vector<32xf32> to vector<32x1xf32>
    %46 = arith.truncf %43 : vector<32x32xf32> to vector<32x32xbf16>
    %cst_17 = arith.constant dense<0.000000e+00> : vector<32x64xf32>
    %47 = tpu.matmul %46, %35, %cst_17 {dimension_numbers = #tpu.dot_dimension_numbers<[1], [0], [0], [1], [0, 0, 1, 1], [], []>} : vector<32x32xbf16>, vector<32x64xbf16>, vector<32x64xf32> -> vector<32x64xf32>
    %48 = tpu.reciprocal %45 {approx = true} : vector<32x1xf32> -> vector<32x1xf32>
    %49 = vector.broadcast %48 : vector<32x1xf32> to vector<32x64xf32>
    %50 = arith.mulf %47, %49 : vector<32x64xf32>
    %51 = arith.truncf %50 : vector<32x64xf32> to vector<32x64xbf16>
    %c0_18 = arith.constant 0 : index
    %c64 = arith.constant 64 : index
    %52 = vector.load %arg8[%c0_18, %c64] : memref<32x256xbf16, #tpu.memory_space<vmem>>, vector<32x64xbf16>
    tpu.vector_store %arg8[%c0_18, %c64], %51 {strides = array<i32>} : memref<32x256xbf16, #tpu.memory_space<vmem>>, vector<32x64xbf16>,
    %53 = vector.extract_strided_slice %9 {offsets = [0, 128], sizes = [32, 64], strides = [1, 1]} : vector<32x768xbf16> to vector<32x64xbf16>
    %54 = vector.extract_strided_slice %9 {offsets = [0, 384], sizes = [32, 64], strides = [1, 1]} : vector<32x768xbf16> to vector<32x64xbf16>
    %55 = vector.extract_strided_slice %9 {offsets = [0, 640], sizes = [32, 64], strides = [1, 1]} : vector<32x768xbf16> to vector<32x64xbf16>
    %cst_19 = arith.constant dense<0.000000e+00> : vector<32x32xf32>
    %56 = tpu.matmul %53, %54, %cst_19 {dimension_numbers = #tpu.dot_dimension_numbers<[1], [1], [0], [0], [0, 0, 1, 0], [], []>} : vector<32x64xbf16>, vector<32x64xbf16>, vector<32x32xf32> -> vector<32x32xf32>
    %cst_20 = arith.constant -1.000000e+30 : f32
    %57 = vector.broadcast %cst_20 : f32 to vector<32x32xf32>
    %58 = arith.select %12, %56, %57 : vector<32x32xi1>, vector<32x32xf32>
    %cst_21 = arith.constant dense<0xFF800000> : vector<32xf32>
    %59 = vector.multi_reduction <maximumf>, %58, %cst_21 [1] : vector<32x32xf32> to vector<32xf32>
    %60 = vector.shape_cast %59 : vector<32xf32> to vector<32x1xf32>
    %61 = vector.broadcast %60 : vector<32x1xf32> to vector<32x32xf32>
    %62 = arith.subf %58, %61 : vector<32x32xf32>
    %63 = math.exp %62 : vector<32x32xf32>
    %cst_22 = arith.constant dense<0.000000e+00> : vector<32xf32>
    %64 = vector.multi_reduction <add>, %63, %cst_22 [1] : vector<32x32xf32> to vector<32xf32>
    %65 = vector.shape_cast %64 : vector<32xf32> to vector<32x1xf32>
    %66 = arith.truncf %63 : vector<32x32xf32> to vector<32x32xbf16>
    %cst_23 = arith.constant dense<0.000000e+00> : vector<32x64xf32>
    %67 = tpu.matmul %66, %55, %cst_23 {dimension_numbers = #tpu.dot_dimension_numbers<[1], [0], [0], [1], [0, 0, 1, 1], [], []>} : vector<32x32xbf16>, vector<32x64xbf16>, vector<32x64xf32> -> vector<32x64xf32>
    %68 = tpu.reciprocal %65 {approx = true} : vector<32x1xf32> -> vector<32x1xf32>
    %69 = vector.broadcast %68 : vector<32x1xf32> to vector<32x64xf32>
    %70 = arith.mulf %67, %69 : vector<32x64xf32>
    %71 = arith.truncf %70 : vector<32x64xf32> to vector<32x64xbf16>
    %c0_24 = arith.constant 0 : index
    %c128 = arith.constant 128 : index
    %72 = vector.load %arg8[%c0_24, %c128] : memref<32x256xbf16, #tpu.memory_space<vmem>>, vector<32x64xbf16>
    tpu.vector_store %arg8[%c0_24, %c128], %71 {strides = array<i32>} : memref<32x256xbf16, #tpu.memory_space<vmem>>, vector<32x64xbf16>,
    %73 = vector.extract_strided_slice %9 {offsets = [0, 192], sizes = [32, 64], strides = [1, 1]} : vector<32x768xbf16> to vector<32x64xbf16>
    %74 = vector.extract_strided_slice %9 {offsets = [0, 448], sizes = [32, 64], strides = [1, 1]} : vector<32x768xbf16> to vector<32x64xbf16>
    %75 = vector.extract_strided_slice %9 {offsets = [0, 704], sizes = [32, 64], strides = [1, 1]} : vector<32x768xbf16> to vector<32x64xbf16>
    %cst_25 = arith.constant dense<0.000000e+00> : vector<32x32xf32>
    %76 = tpu.matmul %73, %74, %cst_25 {dimension_numbers = #tpu.dot_dimension_numbers<[1], [1], [0], [0], [0, 0, 1, 0], [], []>} : vector<32x64xbf16>, vector<32x64xbf16>, vector<32x32xf32> -> vector<32x32xf32>
    %cst_26 = arith.constant -1.000000e+30 : f32
    %77 = vector.broadcast %cst_26 : f32 to vector<32x32xf32>
    %78 = arith.select %12, %76, %77 : vector<32x32xi1>, vector<32x32xf32>
    %cst_27 = arith.constant dense<0xFF800000> : vector<32xf32>
    %79 = vector.multi_reduction <maximumf>, %78, %cst_27 [1] : vector<32x32xf32> to vector<32xf32>
    %80 = vector.shape_cast %79 : vector<32xf32> to vector<32x1xf32>
    %81 = vector.broadcast %80 : vector<32x1xf32> to vector<32x32xf32>
    %82 = arith.subf %78, %81 : vector<32x32xf32>
    %83 = math.exp %82 : vector<32x32xf32>
    %cst_28 = arith.constant dense<0.000000e+00> : vector<32xf32>
    %84 = vector.multi_reduction <add>, %83, %cst_28 [1] : vector<32x32xf32> to vector<32xf32>
    %85 = vector.shape_cast %84 : vector<32xf32> to vector<32x1xf32>
    %86 = arith.truncf %83 : vector<32x32xf32> to vector<32x32xbf16>
    %cst_29 = arith.constant dense<0.000000e+00> : vector<32x64xf32>
    %87 = tpu.matmul %86, %75, %cst_29 {dimension_numbers = #tpu.dot_dimension_numbers<[1], [0], [0], [1], [0, 0, 1, 1], [], []>} : vector<32x32xbf16>, vector<32x64xbf16>, vector<32x64xf32> -> vector<32x64xf32>
    %88 = tpu.reciprocal %85 {approx = true} : vector<32x1xf32> -> vector<32x1xf32>
    %89 = vector.broadcast %88 : vector<32x1xf32> to vector<32x64xf32>
    %90 = arith.mulf %87, %89 : vector<32x64xf32>
    %91 = arith.truncf %90 : vector<32x64xf32> to vector<32x64xbf16>
    %c0_30 = arith.constant 0 : index
    %c192 = arith.constant 192 : index
    %92 = vector.load %arg8[%c0_30, %c192] : memref<32x256xbf16, #tpu.memory_space<vmem>>, vector<32x64xbf16>
    tpu.vector_store %arg8[%c0_30, %c192], %91 {strides = array<i32>} : memref<32x256xbf16, #tpu.memory_space<vmem>>, vector<32x64xbf16>,
    %c0_31 = arith.constant 0 : index
    %c0_32 = arith.constant 0 : index
    %93 = vector.load %arg8[%c0_31, %c0_32] : memref<32x256xbf16, #tpu.memory_space<vmem>>, vector<32x256xbf16>
    %c0_33 = arith.constant 0 : index
    %c0_34 = arith.constant 0 : index
    %94 = vector.load %arg5[%c0_33, %c0_34] : memref<256x256xbf16, #tpu.memory_space<vmem>>, vector<256x256xbf16>
    %cst_35 = arith.constant dense<0.000000e+00> : vector<32x256xf32>
    %95 = tpu.matmul %93, %94, %cst_35 {dimension_numbers = #tpu.dot_dimension_numbers<[1], [0], [0], [1], [0, 0, 1, 1], [], []>} : vector<32x256xbf16>, vector<256x256xbf16>, vector<32x256xf32> -> vector<32x256xf32>
    %c0_36 = arith.constant 0 : index
    %c0_37 = arith.constant 0 : index
    %96 = vector.load %arg6[%c0_36, %c0_37] : memref<1x256xf32, #tpu.memory_space<vmem>>, vector<1x256xf32>
    %97 = vector.shape_cast %96 : vector<1x256xf32> to vector<256xf32>
    %cst_38 = arith.constant 1.000000e+00 : f32
    %98 = vector.broadcast %cst_38 : f32 to vector<256xf32>
    %99 = arith.mulf %97, %98 : vector<256xf32>
    %100 = vector.shape_cast %99 : vector<256xf32> to vector<1x256xf32>
    %101 = vector.broadcast %100 : vector<1x256xf32> to vector<32x256xf32>
    %102 = arith.addf %95, %101 : vector<32x256xf32>
    %c0_39 = arith.constant 0 : index
    %c0_40 = arith.constant 0 : index
    %c0_41 = arith.constant 0 : index
    %c0_42 = arith.constant 0 : index
    %103 = vector.load %arg7[%c0_39, %c0_40, %c0_41, %c0_42] : memref<1x1x32x256xf32, #tpu.memory_space<vmem>>, vector<1x1x32x256xf32>
    %104 = vector.shape_cast %103 : vector<1x1x32x256xf32> to vector<32x256xf32>
    %105 = vector.shape_cast %102 : vector<32x256xf32> to vector<1x1x32x256xf32>
    tpu.vector_store %arg7[%c0_39, %c0_40, %c0_41, %c0_42], %105 {strides = array<i32>} : memref<1x1x32x256xf32, #tpu.memory_space<vmem>>, vector<1x1x32x256xf32>,
    return
  }
  func.func @transform_0(%arg0: i32, %arg1: i32) -> (i32, i32, i32) {
    %c0_i32 = arith.constant 0 : i32
    %c0_i32_0 = arith.constant 0 : i32
    %c0_i32_1 = arith.constant 0 : i32
    return %arg1, %c0_i32, %c0_i32_0 : i32, i32, i32
  }
  func.func @transform_1(%arg0: i32, %arg1: i32) -> (i32, i32) {
    %c0_i32 = arith.constant 0 : i32
    %c0_i32_0 = arith.constant 0 : i32
    return %c0_i32, %arg0 : i32, i32
  }
  func.func @transform_2(%arg0: i32, %arg1: i32) -> (i32, i32) {
    %c0_i32 = arith.constant 0 : i32
    %c0_i32_0 = arith.constant 0 : i32
    return %c0_i32, %arg0 : i32, i32
  }
  func.func @transform_3(%arg0: i32, %arg1: i32) -> (i32, i32) {
    %c0_i32 = arith.constant 0 : i32
    %c0_i32_0 = arith.constant 0 : i32
    return %arg0, %c0_i32 : i32, i32
  }
  func.func @transform_4(%arg0: i32, %arg1: i32) -> (i32, i32) {
    %c0_i32 = arith.constant 0 : i32
    %c0_i32_0 = arith.constant 0 : i32
    %c0_i32_1 = arith.constant 0 : i32
    return %c0_i32, %c0_i32_0 : i32, i32
  }
  func.func @transform_5(%arg0: i32, %arg1: i32) -> (i32, i32, i32, i32) {
    %c0_i32 = arith.constant 0 : i32
    %c0_i32_0 = arith.constant 0 : i32
    %c0_i32_1 = arith.constant 0 : i32
    return %arg1, %arg0, %c0_i32, %c0_i32_0 : i32, i32, i32, i32
  }
}

</mosaic_0001>

<llo_original>
// kernel: tpu_custom_call.1
$region0: #{tpu_custom_call.1}
  #allocation0 [shape = 'u32[]', space=smem, size = 0x4, offset = 0x4, fixed_abs, tag = 'smem constant byte address 0x4 - core index']
  #allocation1 [shape = 'u32[144,128]{1,0:T(1,128)}', space=vmem, size = 0x12000, scoped, tag = 'internal scratch']
  #allocation2 [shape = 'bf16[32,256]{1,0:T(8,128)(2,1)}', space=vmem, size = 0x4000, scoped, tag = 'scratch operand']
  %s0 = inlined_call_operand.hbm [shape: bf16[2,32,256], index: 0, kind: input, shape index: {}]
  %s1 = inlined_call_operand.hbm [shape: bf16[256,768], index: 1, kind: input, shape index: {}]
  %s2 = inlined_call_operand.hbm [shape: f32[1,768], index: 2, kind: input, shape index: {}]
  %s3 = inlined_call_operand.hbm [shape: bf16[256,256], index: 3, kind: input, shape index: {}]
  %s4 = inlined_call_operand.vmem [shape: f32[1,256], index: 4, kind: input, shape index: {}]
  %s5 = inlined_call_operand.hbm [shape: f32[2,1,32,256], index: 5, kind: output, shape index: {}]
  %s6 = sld [smem:[#allocation0]]
  $region69: #{tpu_custom_call.1} parent=0
    _
  %s8 = ssub.s32 1, %s6
  %s9 = scalar_select 0, %s8, %s6
  $region1: #{tpu_custom_call.1} parent=0
    #allocation3 [shape = 'u8[32768]{0}', space=vmem, size = 0x8000, scoped, tag = 'input window, operand 0']
    #allocation4 [shape = 's32[2]{0}', space=sflag, size = 0x8, scoped, tag = 'scoped memory for tpu_custom_call.1']
    #allocation5 [shape = 's32[2]{0}', space=sflag, size = 0x8, scoped, tag = 'scoped memory for tpu_custom_call.1']
    #allocation6 [shape = 'u8[393216]{0}', space=vmem, size = 0x60000, scoped, tag = 'input window, operand 1, single buffered']
    #allocation7 [shape = 's32[1]{0}', space=sflag, size = 0x4, scoped, tag = 'scoped memory for tpu_custom_call.1']
    #allocation8 [shape = 'u8[3072]{0}', space=vmem, size = 0xc00, scoped, tag = 'input window, operand 2, single buffered']
    #allocation9 [shape = 'u8[131072]{0}', space=vmem, size = 0x20000, scoped, tag = 'input window, operand 3, single buffered']
    #allocation10 [shape = 's32[1]{0}', space=sflag, size = 0x4, scoped, tag = 'scoped memory for tpu_custom_call.1']
    #allocation11 [shape = 'u8[65536]{0}', space=vmem, size = 0x10000, scoped, tag = 'output window, operand 0']
    %10 = vsyncpa [#allocation4], 0
    %s11 = scalar_lea.sflag [#allocation4], 1
    %12 = vsyncpa %s11, 0
    %13 = vsyncpa [#allocation7], 0
    %14 = vsyncpa [#allocation10], 0
    %15 = vsyncpa [#allocation5], 0
    %s16 = scalar_lea.sflag [#allocation5], 1
    %17 = vsyncpa %s16, 0
    loop: start=0, step=1, limit=4
    $region2: #{tpu_custom_call.1} parent=1 // loop_pre_header
      _
    $region3: #{tpu_custom_call.1} parent=1 // loop_header
      %s19 = sphi 0, %s23
      %p20 = scmp.ge.s32.totalorder %s19, 4
      %s26 = sphi 0, %s38
      %s27 = sphi 0, %s34
      %s28 = sphi 0, %s26
      %s29 = sphi 0, %s27
      %s30 = sphi 0, %s28
      %s31 = sphi 0, %s29
      %s41 = sphi 0, %s43
      %s44 = sphi 0, %s41
      %s45 = sphi 0, %s44
      %s61 = sphi 0, %s45
      %s67 = sphi 0, %s69
      %s70 = sphi 0, %s67
      %s71 = sphi 0, %s70
      %s87 = sphi 0, %s71
      %s93 = sphi 0, %s95
      %s96 = sphi 0, %s93
      %s97 = sphi 0, %s96
      %s113 = sphi 0, %s97
      %s119 = sphi 0, %s121
      %s122 = sphi 0, %s119
      %s123 = sphi 0, %s122
      %s139 = sphi 0, %s123
      %s143 = sphi 0, %s143
      %s145 = sphi 0, %s143
      %s146 = sphi 0, %s145
      %s160 = sphi 0, %s146
      %s168 = sphi 0, %s170
      %s171 = sphi 0, %s168
      %s172 = sphi 0, %s171
      %s188 = sphi 0, %s172
    $region4: #{tpu_custom_call.1} parent=1 // loop_header_branch
      %22 = sbr.rel (%p20) target = $region8
    $region5: #{tpu_custom_call.1} parent=1 // loop_body
      %s24 = ssub.s32 %s19, 1
      %s25 = ssub.s32 %s19, 2
      %s32 = sadd.s32 1, %s27
      %p33 = scmp.ge.s32.totalorder %s32, 2
      %s34 = scalar_select %p33, 0, %s32
      %s35 = sadd.s32 1, %s26
      %s36 = scalar_select %p33, %s35, %s26
      %p37 = scmp.ge.s32.totalorder %s36, 1
      %s38 = scalar_select %p37, 0, %s36
      %s39 = ssub.s32 %s27, %s34
      %p40 = scmp.eq.s32.totalorder %s39, 0
      %s42 = sadd.s32 %s41, 1
      %s43 = scalar_select %p40, %s41, %s42
      %p46 = pneg %p40
      %p47 = scmp.eq.s32.totalorder %s19, 1
      %p48 = por %p46, %p47
      %p49 = scmp.ne.s32.totalorder %s41, %s44
      %p50 = scmp.eq.s32.totalorder %s19, 0
      %p51 = por %p49, %p50
      %p52 = scmp.ne.s32.totalorder %s41, %s44
      %p53 = scmp.eq.s32.totalorder %s24, 1
      %p54 = por %p52, %p53
      %p55 = scmp.ne.s32.totalorder %s44, %s45
      %p56 = scmp.eq.s32.totalorder %s24, 0
      %p57 = por %p55, %p56
      %p58 = scmp.ne.s32.totalorder %s44, %s45
      %p59 = scmp.eq.s32.totalorder %s25, 1
      %p60 = por %p58, %p59
      %p62 = scmp.ne.s32.totalorder %s45, %s61
      %p63 = scmp.eq.s32.totalorder %s25, 0
      %p64 = por %p62, %p63
      %s65 = ssub.s32 %s26, %s38
      %p66 = scmp.eq.s32.totalorder %s65, 0
      %s68 = sadd.s32 %s67, 1
      %s69 = scalar_select %p66, %s67, %s68
      %p72 = pneg %p66
      %p73 = scmp.eq.s32.totalorder %s19, 1
      %p74 = por %p72, %p73
      %p75 = scmp.ne.s32.totalorder %s67, %s70
      %p76 = scmp.eq.s32.totalorder %s19, 0
      %p77 = por %p75, %p76
      %p78 = scmp.ne.s32.totalorder %s67, %s70
      %p79 = scmp.eq.s32.totalorder %s24, 1
      %p80 = por %p78, %p79
      %p81 = scmp.ne.s32.totalorder %s70, %s71
      %p82 = scmp.eq.s32.totalorder %s24, 0
      %p83 = por %p81, %p82
      %p84 = scmp.ne.s32.totalorder %s70, %s71
      %p85 = scmp.eq.s32.totalorder %s25, 1
      %p86 = por %p84, %p85
      %p88 = scmp.ne.s32.totalorder %s71, %s87
      %p89 = scmp.eq.s32.totalorder %s25, 0
      %p90 = por %p88, %p89
      %s91 = ssub.s32 %s26, %s38
      %p92 = scmp.eq.s32.totalorder %s91, 0
      %s94 = sadd.s32 %s93, 1
      %s95 = scalar_select %p92, %s93, %s94
      %p98 = pneg %p92
      %p99 = scmp.eq.s32.totalorder %s19, 1
      %p100 = por %p98, %p99
      %p101 = scmp.ne.s32.totalorder %s93, %s96
      %p102 = scmp.eq.s32.totalorder %s19, 0
      %p103 = por %p101, %p102
      %p104 = scmp.ne.s32.totalorder %s93, %s96
      %p105 = scmp.eq.s32.totalorder %s24, 1
      %p106 = por %p104, %p105
      %p107 = scmp.ne.s32.totalorder %s96, %s97
      %p108 = scmp.eq.s32.totalorder %s24, 0
      %p109 = por %p107, %p108
      %p110 = scmp.ne.s32.totalorder %s96, %s97
      %p111 = scmp.eq.s32.totalorder %s25, 1
      %p112 = por %p110, %p111
      %p114 = scmp.ne.s32.totalorder %s97, %s113
      %p115 = scmp.eq.s32.totalorder %s25, 0
      %p116 = por %p114, %p115
      %s117 = ssub.s32 %s26, %s38
      %p118 = scmp.eq.s32.totalorder %s117, 0
      %s120 = sadd.s32 %s119, 1
      %s121 = scalar_select %p118, %s119, %s120
      %p124 = pneg %p118
      %p125 = scmp.eq.s32.totalorder %s19, 1
      %p126 = por %p124, %p125
      %p127 = scmp.ne.s32.totalorder %s119, %s122
      %p128 = scmp.eq.s32.totalorder %s19, 0
      %p129 = por %p127, %p128
      %p130 = scmp.ne.s32.totalorder %s119, %s122
      %p131 = scmp.eq.s32.totalorder %s24, 1
      %p132 = por %p130, %p131
      %p133 = scmp.ne.s32.totalorder %s122, %s123
      %p134 = scmp.eq.s32.totalorder %s24, 0
      %p135 = por %p133, %p134
      %p136 = scmp.ne.s32.totalorder %s122, %s123
      %p137 = scmp.eq.s32.totalorder %s25, 1
      %p138 = por %p136, %p137
      %p140 = scmp.ne.s32.totalorder %s123, %s139
      %p141 = scmp.eq.s32.totalorder %s25, 0
      %p142 = por %p140, %p141
      %s144 = sadd.s32 %s143, 1
      %p147 = scmp.eq.s32.totalorder %s19, 1
      %p148 = scmp.ne.s32.totalorder %s143, %s145
      %p149 = scmp.eq.s32.totalorder %s19, 0
      %p150 = por %p148, %p149
      %p151 = scmp.ne.s32.totalorder %s143, %s145
      %p152 = scmp.eq.s32.totalorder %s24, 1
      %p153 = por %p151, %p152
      %p154 = scmp.ne.s32.totalorder %s145, %s146
      %p155 = scmp.eq.s32.totalorder %s24, 0
      %p156 = por %p154, %p155
      %p157 = scmp.ne.s32.totalorder %s145, %s146
      %p158 = scmp.eq.s32.totalorder %s25, 1
      %p159 = por %p157, %p158
      %p161 = scmp.ne.s32.totalorder %s146, %s160
      %p162 = scmp.eq.s32.totalorder %s25, 0
      %p163 = por %p161, %p162
      %s164 = ssub.s32 %s27, %s34
      %s165 = ssub.s32 %s26, %s38
      %s166 = sor.u32 %s164, %s165
      %p167 = scmp.eq.s32.totalorder %s166, 0
      %s169 = sadd.s32 %s168, 1
      %s170 = scalar_select %p167, %s168, %s169
      %p173 = pneg %p167
      %p174 = scmp.eq.s32.totalorder %s19, 1
      %p175 = por %p173, %p174
      %p176 = scmp.ne.s32.totalorder %s168, %s171
      %p177 = scmp.eq.s32.totalorder %s19, 0
      %p178 = por %p176, %p177
      %p179 = scmp.ne.s32.totalorder %s168, %s171
      %p180 = scmp.eq.s32.totalorder %s24, 1
      %p181 = por %p179, %p180
      %p182 = scmp.ne.s32.totalorder %s171, %s172
      %p183 = scmp.eq.s32.totalorder %s24, 0
      %p184 = por %p182, %p183
      %p185 = scmp.ne.s32.totalorder %s171, %s172
      %p186 = scmp.eq.s32.totalorder %s25, 1
      %p187 = por %p185, %p186
      %p189 = scmp.ne.s32.totalorder %s172, %s188
      %p190 = scmp.eq.s32.totalorder %s25, 0
      %p191 = por %p189, %p190
      %p192 = scmp.le.s32.totalorder 1, %s19
      %p193 = scmp.lt.s32.totalorder %s19, 3
      %p194 = pnand %p192, %p193
      %p195 = pneg %p194
      // Predicated region
      $region9: #{tpu_custom_call.1} parent=5 // pred_check
        _
      $region10: #{tpu_custom_call.1} parent=5 // pred_check_branch
        %197 = sbr.rel (%p194) target = $region12
      $region11: #{tpu_custom_call.1} parent=5 // pred_region
        %s198 = ssub.s32 %s19, 1
        // Predicated region
        $region13: #{tpu_custom_call.1} parent=11 // pred_check
          %p199 = pneg %p83
        $region14: #{tpu_custom_call.1} parent=11 // pred_check_branch
          %201 = sbr.rel (%p199) target = $region16
        $region15: #{tpu_custom_call.1} parent=11 // pred_region
          %s202 = smul.u32 6, %s28
          %s204 = ssub.s32 12288, 12288
          %205 = vsyncadd [#allocation7], %s204
          %s206 = smul.addr %s202, 64
          %s207 = scalar_lea.hbm %s1, %s206
          %s208 = sshll.u32 [#allocation6], 4
          %s209 = int_to_ptr.vmem [resolvable:$true] %s208
          %214 = dma.hbm_to_vmem [thread:$0]  %s207, 12288, %s209, [#allocation7], 384, 384, 24
        $region16: #{tpu_custom_call.1} parent=11 // pred_fallthru
          _
        // Predicated region
        $region17: #{tpu_custom_call.1} parent=11 // pred_check
          %p215 = pneg %p109
        $region18: #{tpu_custom_call.1} parent=11 // pred_check_branch
          %217 = sbr.rel (%p215) target = $region20
        $region19: #{tpu_custom_call.1} parent=11 // pred_region
          %s218 = smul.u32 6, %s28
          %s220 = ssub.s32 96, 96
          %221 = vsyncadd [#allocation7], %s220
          %s222 = smul.addr %s218, 16
          %s223 = scalar_lea.hbm %s2, %s222
          %s225 = sshll.u32 [#allocation8], 4
          %s226 = int_to_ptr.vmem [resolvable:$true] %s225
          %228 = dma.hbm_to_vmem [thread:$0]  %s223, 96, %s226, [#allocation7]
        $region20: #{tpu_custom_call.1} parent=11 // pred_fallthru
          _
        // Predicated region
        $region21: #{tpu_custom_call.1} parent=11 // pred_check
          %p229 = pneg %p135
        $region22: #{tpu_custom_call.1} parent=11 // pred_check_branch
          %231 = sbr.rel (%p229) target = $region24
        $region23: #{tpu_custom_call.1} parent=11 // pred_region
          %s232 = smul.u32 32, %s28
          %s234 = ssub.s32 4096, 4096
          %235 = vsyncadd [#allocation10], %s234
          %s236 = smul.addr %s232, 2
          %s237 = smul.addr %s236, 64
          %s238 = scalar_lea.hbm %s3, %s237
          %s239 = sshll.u32 [#allocation9], 4
          %s240 = int_to_ptr.vmem [resolvable:$true] %s239
          %245 = dma.hbm_to_vmem [thread:$0]  %s238, 4096, %s240, [#allocation10], 128, 128, 8
        $region24: #{tpu_custom_call.1} parent=11 // pred_fallthru
          _
        // Predicated region
        $region25: #{tpu_custom_call.1} parent=11 // pred_check
          %p246 = pneg %p156
        $region26: #{tpu_custom_call.1} parent=11 // pred_check_branch
          %248 = sbr.rel (%p246) target = $region28
        $region27: #{tpu_custom_call.1} parent=11 // pred_region
          _
        $region28: #{tpu_custom_call.1} parent=11 // pred_fallthru
          _
      $region12: #{tpu_custom_call.1} parent=5 // pred_fallthru
        _
      %p249 = scmp.lt.s32.totalorder %s19, 2
      // Predicated region
      $region29: #{tpu_custom_call.1} parent=5 // pred_check
        %p250 = pneg %p249
      $region30: #{tpu_custom_call.1} parent=5 // pred_check_branch
        %252 = sbr.rel (%p250) target = $region32
      $region31: #{tpu_custom_call.1} parent=5 // pred_region
        // Predicated region
        $region33: #{tpu_custom_call.1} parent=31 // pred_check
          %p253 = pneg %p51
        $region34: #{tpu_custom_call.1} parent=31 // pred_check_branch
          %255 = sbr.rel (%p253) target = $region36
        $region35: #{tpu_custom_call.1} parent=31 // pred_region
          %s256 = sand.u32 %s41, 1
          %s257 = scalar_lea.sflag [#allocation4], %s256
          %s258 = sand.u32 %s41, 1
          %s259 = smul.addr %s258, 32
          %s260 = scalar_lea.vmem [#allocation3], %s259
          %s262 = ssub.s32 512, 512
          %263 = vsyncadd %s257, %s262
          %s264 = smul.addr %s27, 8
          %s265 = smul.addr %s264, 64
          %s266 = scalar_lea.hbm %s0, %s265
          %s267 = sshll.u32 %s260, 4
          %s268 = int_to_ptr.vmem [resolvable:$true] %s267
          %273 = dma.hbm_to_vmem [thread:$0]  %s266, 512, %s268, %s257, 128, 128, 8
        $region36: #{tpu_custom_call.1} parent=31 // pred_fallthru
          _
      $region32: #{tpu_custom_call.1} parent=5 // pred_fallthru
        _
      %p274 = scmp.le.s32.totalorder 1, %s19
      %p275 = scmp.lt.s32.totalorder %s19, 3
      %p276 = pnand %p274, %p275
      %p277 = pneg %p276
      // Predicated region
      $region37: #{tpu_custom_call.1} parent=5 // pred_check
        _
      $region38: #{tpu_custom_call.1} parent=5 // pred_check_branch
        %279 = sbr.rel (%p276) target = $region40
      $region39: #{tpu_custom_call.1} parent=5 // pred_region
        %s280 = ssub.s32 %s19, 1
        %s281 = sand.u32 %s44, 1
        %s282 = scalar_lea.sflag [#allocation4], %s281
        %s283 = sand.u32 %s44, 1
        %s284 = smul.addr %s283, 32
        %s285 = scalar_lea.vmem [#allocation3], %s284
        // Predicated region
        $region41: #{tpu_custom_call.1} parent=39 // pred_check
          %p286 = pneg %p57
        $region42: #{tpu_custom_call.1} parent=39 // pred_check_branch
          %288 = sbr.rel (%p286) target = $region44
        $region43: #{tpu_custom_call.1} parent=39 // pred_region
          %289 = dma.done %s282, 512
        $region44: #{tpu_custom_call.1} parent=39 // pred_fallthru
          _
        // Predicated region
        $region45: #{tpu_custom_call.1} parent=39 // pred_check
          %p290 = pneg %p83
        $region46: #{tpu_custom_call.1} parent=39 // pred_check_branch
          %292 = sbr.rel (%p290) target = $region48
        $region47: #{tpu_custom_call.1} parent=39 // pred_region
          %293 = dma.done [#allocation7], 12288
        $region48: #{tpu_custom_call.1} parent=39 // pred_fallthru
          _
        // Predicated region
        $region49: #{tpu_custom_call.1} parent=39 // pred_check
          %p294 = pneg %p109
        $region50: #{tpu_custom_call.1} parent=39 // pred_check_branch
          %296 = sbr.rel (%p294) target = $region52
        $region51: #{tpu_custom_call.1} parent=39 // pred_region
          %297 = dma.done [#allocation7], 96
        $region52: #{tpu_custom_call.1} parent=39 // pred_fallthru
          _
        // Predicated region
        $region53: #{tpu_custom_call.1} parent=39 // pred_check
          %p298 = pneg %p135
        $region54: #{tpu_custom_call.1} parent=39 // pred_check_branch
          %300 = sbr.rel (%p298) target = $region56
        $region55: #{tpu_custom_call.1} parent=39 // pred_region
          %301 = dma.done [#allocation10], 4096
        $region56: #{tpu_custom_call.1} parent=39 // pred_fallthru
          _
        %s302 = sand.u32 %s44, 1
        %s303 = scalar_lea.sflag [#allocation4], %s302
        %s304 = sand.u32 %s44, 1
        %s305 = smul.addr %s304, 32
        %s306 = scalar_lea.vmem [#allocation3], %s305
        %p307 = pneg %p57
        %p308 = pneg %p54
        %p309 = pneg %p83
        %p310 = pneg %p80
        %p311 = pneg %p109
        %p312 = pneg %p106
        %p313 = pneg %p135
        %p314 = pneg %p132
        %p315 = pneg %p156
        %p316 = pneg %p153
        %p317 = pneg %p184
        %p318 = pneg %p181
        %s319 = sand.u32 %s171, 1
        %s320 = scalar_lea.sflag [#allocation5], %s319
        %s321 = sand.u32 %s171, 1
        %s322 = smul.addr %s321, 64
        %s323 = scalar_lea.vmem [#allocation11], %s322
        %s324 = smul.u32 6, %s28
        %s325 = smul.u32 6, %s28
        %s326 = smul.u32 32, %s28
        %v328 = vld [vmem:[%s285] sm:$0xff]
        %v329 = vld [vmem:[%s285 + $0x8] sm:$0xff]
        %v330 = vld [vmem:[%s285 + $0x10] sm:$0xff]
        %v331 = vld [vmem:[%s285 + $0x18] sm:$0xff]
        %v332 = vld [vmem:[#allocation6] sm:$0xff]
        %v333 = vld [vmem:[#allocation6 + $0x8] sm:$0xff]
        %v334 = vld [vmem:[#allocation6 + $0x10] sm:$0xff]
        %v335 = vld [vmem:[#allocation6 + $0x18] sm:$0xff]
        %v336 = vld [vmem:[#allocation6 + $0x20] sm:$0xff]
        %v337 = vld [vmem:[#allocation6 + $0x28] sm:$0xff]
        %v338 = vld [vmem:[#allocation6 + $0x30] sm:$0xff]
        %v339 = vld [vmem:[#allocation6 + $0x38] sm:$0xff]
        %v340 = vld [vmem:[#allocation6 + $0x40] sm:$0xff]
        %v341 = vld [vmem:[#allocation6 + $0x48] sm:$0xff]
        %v342 = vld [vmem:[#allocation6 + $0x50] sm:$0xff]
        %v343 = vld [vmem:[#allocation6 + $0x58] sm:$0xff]
        %v344 = vld [vmem:[#allocation6 + $0x60] sm:$0xff]
        %v345 = vld [vmem:[#allocation6 + $0x68] sm:$0xff]
        %v346 = vld [vmem:[#allocation6 + $0x70] sm:$0xff]
        %v347 = vld [vmem:[#allocation6 + $0x78] sm:$0xff]
        %v348 = vld [vmem:[#allocation6 + $0x80] sm:$0xff]
        %v349 = vld [vmem:[#allocation6 + $0x88] sm:$0xff]
        %v350 = vld [vmem:[#allocation6 + $0x90] sm:$0xff]
        %v351 = vld [vmem:[#allocation6 + $0x98] sm:$0xff]
        %v352 = vld [vmem:[#allocation6 + $0xa0] sm:$0xff]
        %v353 = vld [vmem:[#allocation6 + $0xa8] sm:$0xff]
        %v354 = vld [vmem:[#allocation6 + $0xb0] sm:$0xff]
        %v355 = vld [vmem:[#allocation6 + $0xb8] sm:$0xff]
        %v356 = vld [vmem:[#allocation6 + $0xc0] sm:$0xff]
        %v357 = vld [vmem:[#allocation6 + $0xc8] sm:$0xff]
        %v358 = vld [vmem:[#allocation6 + $0xd0] sm:$0xff]
        %v359 = vld [vmem:[#allocation6 + $0xd8] sm:$0xff]
        %v360 = vld [vmem:[#allocation6 + $0xe0] sm:$0xff]
        %v361 = vld [vmem:[#allocation6 + $0xe8] sm:$0xff]
        %v362 = vld [vmem:[#allocation6 + $0xf0] sm:$0xff]
        %v363 = vld [vmem:[#allocation6 + $0xf8] sm:$0xff]
        %v364 = vld [vmem:[#allocation6 + $0x100] sm:$0xff]
        %v365 = vld [vmem:[#allocation6 + $0x108] sm:$0xff]
        %v366 = vld [vmem:[#allocation6 + $0x110] sm:$0xff]
        %v367 = vld [vmem:[#allocation6 + $0x118] sm:$0xff]
        %v368 = vld [vmem:[#allocation6 + $0x120] sm:$0xff]
        %v369 = vld [vmem:[#allocation6 + $0x128] sm:$0xff]
        %v370 = vld [vmem:[#allocation6 + $0x130] sm:$0xff]
        %v371 = vld [vmem:[#allocation6 + $0x138] sm:$0xff]
        %v372 = vld [vmem:[#allocation6 + $0x140] sm:$0xff]
        %v373 = vld [vmem:[#allocation6 + $0x148] sm:$0xff]
        %v374 = vld [vmem:[#allocation6 + $0x150] sm:$0xff]
        %v375 = vld [vmem:[#allocation6 + $0x158] sm:$0xff]
        %v376 = vld [vmem:[#allocation6 + $0x160] sm:$0xff]
        %v377 = vld [vmem:[#allocation6 + $0x168] sm:$0xff]
        %v378 = vld [vmem:[#allocation6 + $0x170] sm:$0xff]
        %v379 = vld [vmem:[#allocation6 + $0x178] sm:$0xff]
        %v380 = vld [vmem:[#allocation6 + $0x180] sm:$0xff]
        %v381 = vld [vmem:[#allocation6 + $0x188] sm:$0xff]
        %v382 = vld [vmem:[#allocation6 + $0x190] sm:$0xff]
        %v383 = vld [vmem:[#allocation6 + $0x198] sm:$0xff]
        %v384 = vld [vmem:[#allocation6 + $0x1a0] sm:$0xff]
        %v385 = vld [vmem:[#allocation6 + $0x1a8] sm:$0xff]
        %v386 = vld [vmem:[#allocation6 + $0x1b0] sm:$0xff]
        %v387 = vld [vmem:[#allocation6 + $0x1b8] sm:$0xff]
        %v388 = vld [vmem:[#allocation6 + $0x1c0] sm:$0xff]
        %v389 = vld [vmem:[#allocation6 + $0x1c8] sm:$0xff]
        %v390 = vld [vmem:[#allocation6 + $0x1d0] sm:$0xff]
        %v391 = vld [vmem:[#allocation6 + $0x1d8] sm:$0xff]
        %v392 = vld [vmem:[#allocation6 + $0x1e0] sm:$0xff]
        %v393 = vld [vmem:[#allocation6 + $0x1e8] sm:$0xff]
        %v394 = vld [vmem:[#allocation6 + $0x1f0] sm:$0xff]
        %v395 = vld [vmem:[#allocation6 + $0x1f8] sm:$0xff]
        %v396 = vld [vmem:[#allocation6 + $0x200] sm:$0xff]
        %v397 = vld [vmem:[#allocation6 + $0x208] sm:$0xff]
        %v398 = vld [vmem:[#allocation6 + $0x210] sm:$0xff]
        %v399 = vld [vmem:[#allocation6 + $0x218] sm:$0xff]
        %v400 = vld [vmem:[#allocation6 + $0x220] sm:$0xff]
        %v401 = vld [vmem:[#allocation6 + $0x228] sm:$0xff]
        %v402 = vld [vmem:[#allocation6 + $0x230] sm:$0xff]
        %v403 = vld [vmem:[#allocation6 + $0x238] sm:$0xff]
        %v404 = vld [vmem:[#allocation6 + $0x240] sm:$0xff]
        %v405 = vld [vmem:[#allocation6 + $0x248] sm:$0xff]
        %v406 = vld [vmem:[#allocation6 + $0x250] sm:$0xff]
        %v407 = vld [vmem:[#allocation6 + $0x258] sm:$0xff]
        %v408 = vld [vmem:[#allocation6 + $0x260] sm:$0xff]
        %v409 = vld [vmem:[#allocation6 + $0x268] sm:$0xff]
        %v410 = vld [vmem:[#allocation6 + $0x270] sm:$0xff]
        %v411 = vld [vmem:[#allocation6 + $0x278] sm:$0xff]
        %v412 = vld [vmem:[#allocation6 + $0x280] sm:$0xff]
        %v413 = vld [vmem:[#allocation6 + $0x288] sm:$0xff]
        %v414 = vld [vmem:[#allocation6 + $0x290] sm:$0xff]
        %v415 = vld [vmem:[#allocation6 + $0x298] sm:$0xff]
        %v416 = vld [vmem:[#allocation6 + $0x2a0] sm:$0xff]
        %v417 = vld [vmem:[#allocation6 + $0x2a8] sm:$0xff]
        %v418 = vld [vmem:[#allocation6 + $0x2b0] sm:$0xff]
        %v419 = vld [vmem:[#allocation6 + $0x2b8] sm:$0xff]
        %v420 = vld [vmem:[#allocation6 + $0x2c0] sm:$0xff]
        %v421 = vld [vmem:[#allocation6 + $0x2c8] sm:$0xff]
        %v422 = vld [vmem:[#allocation6 + $0x2d0] sm:$0xff]
        %v423 = vld [vmem:[#allocation6 + $0x2d8] sm:$0xff]
        %v424 = vld [vmem:[#allocation6 + $0x2e0] sm:$0xff]
        %v425 = vld [vmem:[#allocation6 + $0x2e8] sm:$0xff]
        %v426 = vld [vmem:[#allocation6 + $0x2f0] sm:$0xff]
        %v427 = vld [vmem:[#allocation6 + $0x2f8] sm:$0xff]
        %v428 = vld [vmem:[#allocation8] sm:$0x3f]
        %v430 = vlaneseq
        %v431 = vshrl.u32 %v430, 7
        %v432 = vsub.s32 0, %v431
        %v433 = vrot.slane %v428, %v432
        %v434 = vlaneseq
        %v435 = vshrl.u32 %v434, 7
        %v436 = vsub.s32 1, %v435
        %v437 = vrot.slane %v428, %v436
        %v438 = vlaneseq
        %v439 = vshrl.u32 %v438, 7
        %v440 = vsub.s32 2, %v439
        %v441 = vrot.slane %v428, %v440
        %v442 = vlaneseq
        %v443 = vshrl.u32 %v442, 7
        %v444 = vsub.s32 3, %v443
        %v445 = vrot.slane %v428, %v444
        %v446 = vlaneseq
        %v447 = vshrl.u32 %v446, 7
        %v448 = vsub.s32 4, %v447
        %v449 = vrot.slane %v428, %v448
        %v450 = vlaneseq
        %v451 = vshrl.u32 %v450, 7
        %v452 = vsub.s32 5, %v451
        %v453 = vrot.slane %v428, %v452
        %v464 = vunpack.c.l.b16 %v328
        %v465 = vunpack.c.h.b16 %v328
        %v466 = vunpack.c.l.b16 %v329
        %v467 = vunpack.c.h.b16 %v329
        %v468 = vunpack.c.l.b16 %v330
        %v469 = vunpack.c.h.b16 %v330
        %v470 = vunpack.c.l.b16 %v331
        %v471 = vunpack.c.h.b16 %v331
        %v472 = vpack.c.b16 %v466, %v464
        %v473 = vpack.c.b16 %v467, %v465
        %v474 = vpack.c.b16 %v470, %v468
        %v475 = vpack.c.b16 %v471, %v469
        %v576 = vunpack.c.l.b16 %v332
        %v577 = vunpack.c.h.b16 %v332
        %v578 = vunpack.c.l.b16 %v333
        %v579 = vunpack.c.h.b16 %v333
        %v580 = vunpack.c.l.b16 %v334
        %v581 = vunpack.c.h.b16 %v334
        %v582 = vunpack.c.l.b16 %v335
        %v583 = vunpack.c.h.b16 %v335
        %v584 = vunpack.c.l.b16 %v336
        %v585 = vunpack.c.h.b16 %v336
        %v586 = vunpack.c.l.b16 %v337
        %v587 = vunpack.c.h.b16 %v337
        %v588 = vunpack.c.l.b16 %v338
        %v589 = vunpack.c.h.b16 %v338
        %v590 = vunpack.c.l.b16 %v339
        %v591 = vunpack.c.h.b16 %v339
        %v592 = vunpack.c.l.b16 %v340
        %v593 = vunpack.c.h.b16 %v340
        %v594 = vunpack.c.l.b16 %v341
        %v595 = vunpack.c.h.b16 %v341
        %v596 = vunpack.c.l.b16 %v342
        %v597 = vunpack.c.h.b16 %v342
        %v598 = vunpack.c.l.b16 %v343
        %v599 = vunpack.c.h.b16 %v343
        %v600 = vunpack.c.l.b16 %v344
        %v601 = vunpack.c.h.b16 %v344
        %v602 = vunpack.c.l.b16 %v345
        %v603 = vunpack.c.h.b16 %v345
        %v604 = vunpack.c.l.b16 %v346
        %v605 = vunpack.c.h.b16 %v346
        %v606 = vunpack.c.l.b16 %v347
        %v607 = vunpack.c.h.b16 %v347
        %v608 = vunpack.c.l.b16 %v348
        %v609 = vunpack.c.h.b16 %v348
        %v610 = vunpack.c.l.b16 %v349
        %v611 = vunpack.c.h.b16 %v349
        %v612 = vunpack.c.l.b16 %v350
        %v613 = vunpack.c.h.b16 %v350
        %v614 = vunpack.c.l.b16 %v351
        %v615 = vunpack.c.h.b16 %v351
        %v616 = vunpack.c.l.b16 %v352
        %v617 = vunpack.c.h.b16 %v352
        %v618 = vunpack.c.l.b16 %v353
        %v619 = vunpack.c.h.b16 %v353
        %v620 = vunpack.c.l.b16 %v354
        %v621 = vunpack.c.h.b16 %v354
        %v622 = vunpack.c.l.b16 %v355
        %v623 = vunpack.c.h.b16 %v355
        %v624 = vunpack.c.l.b16 %v356
        %v625 = vunpack.c.h.b16 %v356
        %v626 = vunpack.c.l.b16 %v357
        %v627 = vunpack.c.h.b16 %v357
        %v628 = vunpack.c.l.b16 %v358
        %v629 = vunpack.c.h.b16 %v358
        %v630 = vunpack.c.l.b16 %v359
        %v631 = vunpack.c.h.b16 %v359
        %v632 = vunpack.c.l.b16 %v360
        %v633 = vunpack.c.h.b16 %v360
        %v634 = vunpack.c.l.b16 %v361
        %v635 = vunpack.c.h.b16 %v361
        %v636 = vunpack.c.l.b16 %v362
        %v637 = vunpack.c.h.b16 %v362
        %v638 = vunpack.c.l.b16 %v363
        %v639 = vunpack.c.h.b16 %v363
        %v640 = vunpack.c.l.b16 %v364
        %v641 = vunpack.c.h.b16 %v364
        %v642 = vunpack.c.l.b16 %v365
        %v643 = vunpack.c.h.b16 %v365
        %v644 = vunpack.c.l.b16 %v366
        %v645 = vunpack.c.h.b16 %v366
        %v646 = vunpack.c.l.b16 %v367
        %v647 = vunpack.c.h.b16 %v367
        %v648 = vunpack.c.l.b16 %v368
        %v649 = vunpack.c.h.b16 %v368
        %v650 = vunpack.c.l.b16 %v369
        %v651 = vunpack.c.h.b16 %v369
        %v652 = vunpack.c.l.b16 %v370
        %v653 = vunpack.c.h.b16 %v370
        %v654 = vunpack.c.l.b16 %v371
        %v655 = vunpack.c.h.b16 %v371
        %v656 = vunpack.c.l.b16 %v372
        %v657 = vunpack.c.h.b16 %v372
        %v658 = vunpack.c.l.b16 %v373
        %v659 = vunpack.c.h.b16 %v373
        %v660 = vunpack.c.l.b16 %v374
        %v661 = vunpack.c.h.b16 %v374
        %v662 = vunpack.c.l.b16 %v375
        %v663 = vunpack.c.h.b16 %v375
        %v664 = vunpack.c.l.b16 %v376
        %v665 = vunpack.c.h.b16 %v376
        %v666 = vunpack.c.l.b16 %v377
        %v667 = vunpack.c.h.b16 %v377
        %v668 = vunpack.c.l.b16 %v378
        %v669 = vunpack.c.h.b16 %v378
        %v670 = vunpack.c.l.b16 %v379
        %v671 = vunpack.c.h.b16 %v379
        %v672 = vunpack.c.l.b16 %v380
        %v673 = vunpack.c.h.b16 %v380
        %v674 = vunpack.c.l.b16 %v381
        %v675 = vunpack.c.h.b16 %v381
        %v676 = vunpack.c.l.b16 %v382
        %v677 = vunpack.c.h.b16 %v382
        %v678 = vunpack.c.l.b16 %v383
        %v679 = vunpack.c.h.b16 %v383
        %v680 = vunpack.c.l.b16 %v384
        %v681 = vunpack.c.h.b16 %v384
        %v682 = vunpack.c.l.b16 %v385
        %v683 = vunpack.c.h.b16 %v385
        %v684 = vunpack.c.l.b16 %v386
        %v685 = vunpack.c.h.b16 %v386
        %v686 = vunpack.c.l.b16 %v387
        %v687 = vunpack.c.h.b16 %v387
        %v688 = vunpack.c.l.b16 %v388
        %v689 = vunpack.c.h.b16 %v388
        %v690 = vunpack.c.l.b16 %v389
        %v691 = vunpack.c.h.b16 %v389
        %v692 = vunpack.c.l.b16 %v390
        %v693 = vunpack.c.h.b16 %v390
        %v694 = vunpack.c.l.b16 %v391
        %v695 = vunpack.c.h.b16 %v391
        %v696 = vunpack.c.l.b16 %v392
        %v697 = vunpack.c.h.b16 %v392
        %v698 = vunpack.c.l.b16 %v393
        %v699 = vunpack.c.h.b16 %v393
        %v700 = vunpack.c.l.b16 %v394
        %v701 = vunpack.c.h.b16 %v394
        %v702 = vunpack.c.l.b16 %v395
        %v703 = vunpack.c.h.b16 %v395
        %v704 = vunpack.c.l.b16 %v396
        %v705 = vunpack.c.h.b16 %v396
        %v706 = vunpack.c.l.b16 %v397
        %v707 = vunpack.c.h.b16 %v397
        %v708 = vunpack.c.l.b16 %v398
        %v709 = vunpack.c.h.b16 %v398
        %v710 = vunpack.c.l.b16 %v399
        %v711 = vunpack.c.h.b16 %v399
        %v712 = vunpack.c.l.b16 %v400
        %v713 = vunpack.c.h.b16 %v400
        %v714 = vunpack.c.l.b16 %v401
        %v715 = vunpack.c.h.b16 %v401
        %v716 = vunpack.c.l.b16 %v402
        %v717 = vunpack.c.h.b16 %v402
        %v718 = vunpack.c.l.b16 %v403
        %v719 = vunpack.c.h.b16 %v403
        %v720 = vunpack.c.l.b16 %v404
        %v721 = vunpack.c.h.b16 %v404
        %v722 = vunpack.c.l.b16 %v405
        %v723 = vunpack.c.h.b16 %v405
        %v724 = vunpack.c.l.b16 %v406
        %v725 = vunpack.c.h.b16 %v406
        %v726 = vunpack.c.l.b16 %v407
        %v727 = vunpack.c.h.b16 %v407
        %v728 = vunpack.c.l.b16 %v408
        %v729 = vunpack.c.h.b16 %v408
        %v730 = vunpack.c.l.b16 %v409
        %v731 = vunpack.c.h.b16 %v409
        %v732 = vunpack.c.l.b16 %v410
        %v733 = vunpack.c.h.b16 %v410
        %v734 = vunpack.c.l.b16 %v411
        %v735 = vunpack.c.h.b16 %v411
        %v736 = vunpack.c.l.b16 %v412
        %v737 = vunpack.c.h.b16 %v412
        %v738 = vunpack.c.l.b16 %v413
        %v739 = vunpack.c.h.b16 %v413
        %v740 = vunpack.c.l.b16 %v414
        %v741 = vunpack.c.h.b16 %v414
        %v742 = vunpack.c.l.b16 %v415
        %v743 = vunpack.c.h.b16 %v415
        %v744 = vunpack.c.l.b16 %v416
        %v745 = vunpack.c.h.b16 %v416
        %v746 = vunpack.c.l.b16 %v417
        %v747 = vunpack.c.h.b16 %v417
        %v748 = vunpack.c.l.b16 %v418
        %v749 = vunpack.c.h.b16 %v418
        %v750 = vunpack.c.l.b16 %v419
        %v751 = vunpack.c.h.b16 %v419
        %v752 = vunpack.c.l.b16 %v420
        %v753 = vunpack.c.h.b16 %v420
        %v754 = vunpack.c.l.b16 %v421
        %v755 = vunpack.c.h.b16 %v421
        %v756 = vunpack.c.l.b16 %v422
        %v757 = vunpack.c.h.b16 %v422
        %v758 = vunpack.c.l.b16 %v423
        %v759 = vunpack.c.h.b16 %v423
        %v760 = vunpack.c.l.b16 %v424
        %v761 = vunpack.c.h.b16 %v424
        %v762 = vunpack.c.l.b16 %v425
        %v763 = vunpack.c.h.b16 %v425
        %v764 = vunpack.c.l.b16 %v426
        %v765 = vunpack.c.h.b16 %v426
        %v766 = vunpack.c.l.b16 %v427
        %v767 = vunpack.c.h.b16 %v427
        %v768 = vpack.c.b16 %v582, %v576
        %v769 = vpack.c.b16 %v583, %v577
        %v770 = vpack.c.b16 %v584, %v578
        %v771 = vpack.c.b16 %v585, %v579
        %v772 = vpack.c.b16 %v586, %v580
        %v773 = vpack.c.b16 %v587, %v581
        %v774 = vpack.c.b16 %v594, %v588
        %v775 = vpack.c.b16 %v595, %v589
        %v776 = vpack.c.b16 %v596, %v590
        %v777 = vpack.c.b16 %v597, %v591
        %v778 = vpack.c.b16 %v598, %v592
        %v779 = vpack.c.b16 %v599, %v593
        %v780 = vpack.c.b16 %v606, %v600
        %v781 = vpack.c.b16 %v607, %v601
        %v782 = vpack.c.b16 %v608, %v602
        %v783 = vpack.c.b16 %v609, %v603
        %v784 = vpack.c.b16 %v610, %v604
        %v785 = vpack.c.b16 %v611, %v605
        %v786 = vpack.c.b16 %v618, %v612
        %v787 = vpack.c.b16 %v619, %v613
        %v788 = vpack.c.b16 %v620, %v614
        %v789 = vpack.c.b16 %v621, %v615
        %v790 = vpack.c.b16 %v622, %v616
        %v791 = vpack.c.b16 %v623, %v617
        %v792 = vpack.c.b16 %v630, %v624
        %v793 = vpack.c.b16 %v631, %v625
        %v794 = vpack.c.b16 %v632, %v626
        %v795 = vpack.c.b16 %v633, %v627
        %v796 = vpack.c.b16 %v634, %v628
        %v797 = vpack.c.b16 %v635, %v629
        %v798 = vpack.c.b16 %v642, %v636
        %v799 = vpack.c.b16 %v643, %v637
        %v800 = vpack.c.b16 %v644, %v638
        %v801 = vpack.c.b16 %v645, %v639
        %v802 = vpack.c.b16 %v646, %v640
        %v803 = vpack.c.b16 %v647, %v641
        %v804 = vpack.c.b16 %v654, %v648
        %v805 = vpack.c.b16 %v655, %v649
        %v806 = vpack.c.b16 %v656, %v650
        %v807 = vpack.c.b16 %v657, %v651
        %v808 = vpack.c.b16 %v658, %v652
        %v809 = vpack.c.b16 %v659, %v653
        %v810 = vpack.c.b16 %v666, %v660
        %v811 = vpack.c.b16 %v667, %v661
        %v812 = vpack.c.b16 %v668, %v662
        %v813 = vpack.c.b16 %v669, %v663
        %v814 = vpack.c.b16 %v670, %v664
        %v815 = vpack.c.b16 %v671, %v665
        %v816 = vpack.c.b16 %v678, %v672
        %v817 = vpack.c.b16 %v679, %v673
        %v818 = vpack.c.b16 %v680, %v674
        %v819 = vpack.c.b16 %v681, %v675
        %v820 = vpack.c.b16 %v682, %v676
        %v821 = vpack.c.b16 %v683, %v677
        %v822 = vpack.c.b16 %v690, %v684
        %v823 = vpack.c.b16 %v691, %v685
        %v824 = vpack.c.b16 %v692, %v686
        %v825 = vpack.c.b16 %v693, %v687
        %v826 = vpack.c.b16 %v694, %v688
        %v827 = vpack.c.b16 %v695, %v689
        %v828 = vpack.c.b16 %v702, %v696
        %v829 = vpack.c.b16 %v703, %v697
        %v830 = vpack.c.b16 %v704, %v698
        %v831 = vpack.c.b16 %v705, %v699
        %v832 = vpack.c.b16 %v706, %v700
        %v833 = vpack.c.b16 %v707, %v701
        %v834 = vpack.c.b16 %v714, %v708
        %v835 = vpack.c.b16 %v715, %v709
        %v836 = vpack.c.b16 %v716, %v710
        %v837 = vpack.c.b16 %v717, %v711
        %v838 = vpack.c.b16 %v718, %v712
        %v839 = vpack.c.b16 %v719, %v713
        %v840 = vpack.c.b16 %v726, %v720
        %v841 = vpack.c.b16 %v727, %v721
        %v842 = vpack.c.b16 %v728, %v722
        %v843 = vpack.c.b16 %v729, %v723
        %v844 = vpack.c.b16 %v730, %v724
        %v845 = vpack.c.b16 %v731, %v725
        %v846 = vpack.c.b16 %v738, %v732
        %v847 = vpack.c.b16 %v739, %v733
        %v848 = vpack.c.b16 %v740, %v734
        %v849 = vpack.c.b16 %v741, %v735
        %v850 = vpack.c.b16 %v742, %v736
        %v851 = vpack.c.b16 %v743, %v737
        %v852 = vpack.c.b16 %v750, %v744
        %v853 = vpack.c.b16 %v751, %v745
        %v854 = vpack.c.b16 %v752, %v746
        %v855 = vpack.c.b16 %v753, %v747
        %v856 = vpack.c.b16 %v754, %v748
        %v857 = vpack.c.b16 %v755, %v749
        %v858 = vpack.c.b16 %v762, %v756
        %v859 = vpack.c.b16 %v763, %v757
        %v860 = vpack.c.b16 %v764, %v758
        %v861 = vpack.c.b16 %v765, %v759
        %v862 = vpack.c.b16 %v766, %v760
        %v863 = vpack.c.b16 %v767, %v761
        %960 = vmatprep.subr.bf16.mxu0 %v811
        %961 = vmatpush1.bf16.msra.mxu0 %v810
        %962 = vmatprep.subr.bf16.mxu0 %v805
        %963 = vmatpush1.bf16.msra.mxu0 %v804
        %964 = vmatprep.subr.bf16.mxu0 %v799
        %965 = vmatpush1.bf16.msra.mxu0 %v798
        %966 = vmatprep.subr.bf16.mxu0 %v793
        %967 = vmatpush1.bf16.msra.mxu0 %v792
        %968 = vmatprep.subr.bf16.mxu0 %v787
        %969 = vmatpush1.bf16.msra.mxu0 %v786
        %970 = vmatprep.subr.bf16.mxu0 %v781
        %971 = vmatpush1.bf16.msra.mxu0 %v780
        %972 = vmatprep.subr.bf16.mxu0 %v775
        %973 = vmatpush1.bf16.msra.mxu0 %v774
        %974 = vmatprep.subr.bf16.mxu0 %v769
        %975 = vmatpush1.bf16.msra.mxu0 %v768
        %976 = vmatprep.subr.bf16.mxu0 %v859
        %977 = vmatpush2.bf16.msra.mxu0 %v858
        %978 = vmatprep.subr.bf16.mxu0 %v853
        %979 = vmatpush2.bf16.msra.mxu0 %v852
        %980 = vmatprep.subr.bf16.mxu0 %v847
        %981 = vmatpush2.bf16.msra.mxu0 %v846
        %982 = vmatprep.subr.bf16.mxu0 %v841
        %983 = vmatpush2.bf16.msra.mxu0 %v840
        %984 = vmatprep.subr.bf16.mxu0 %v835
        %985 = vmatpush2.bf16.msra.mxu0 %v834
        %986 = vmatprep.subr.bf16.mxu0 %v829
        %987 = vmatpush2.bf16.msra.mxu0 %v828
        %988 = vmatprep.subr.bf16.mxu0 %v823
        %989 = vmatpush2.bf16.msra.mxu0 %v822
        %990 = vmatprep.subr.bf16.mxu0 %v817
        %991 = vmatpush2.bf16.msra.mxu0 %v816
        %992 = vmatprep.mubr.bf16.mxu0 %v473
        %993 = vmatmul.mubr.bf16.gmra.mxu0 %v472
        %v994 = vpop.f32.mrf.mxu0
        %v995 = vadd.f32 %v433, %v994
        %v996 = vpop.f32.mrf.mxu0
        %v997 = vadd.f32 %v437, %v996
        %v998 = vpop.f32.mrf.mxu0
        %v999 = vadd.f32 %v433, %v998
        %v1000 = vpop.f32.mrf.mxu0
        %v1001 = vadd.f32 %v437, %v1000
        %1002 = vmatprep.mubr.bf16.mxu0 %v475
        %1003 = vmatmul.mubr.bf16.gmra.mxu0 %v474
        %v1004 = vpop.f32.mrf.mxu0
        %v1005 = vadd.f32 %v433, %v1004
        %v1006 = vpop.f32.mrf.mxu0
        %v1007 = vadd.f32 %v437, %v1006
        %v1008 = vpop.f32.mrf.mxu0
        %v1009 = vadd.f32 %v433, %v1008
        %v1010 = vpop.f32.mrf.mxu0
        %v1011 = vadd.f32 %v437, %v1010
        %1012 = vdwg.mxu0
        %1013 = vmatprep.subr.bf16.mxu0 %v813
        %1014 = vmatpush1.bf16.msra.mxu0 %v812
        %1015 = vmatprep.subr.bf16.mxu0 %v807
        %1016 = vmatpush1.bf16.msra.mxu0 %v806
        %1017 = vmatprep.subr.bf16.mxu0 %v801
        %1018 = vmatpush1.bf16.msra.mxu0 %v800
        %1019 = vmatprep.subr.bf16.mxu0 %v795
        %1020 = vmatpush1.bf16.msra.mxu0 %v794
        %1021 = vmatprep.subr.bf16.mxu0 %v789
        %1022 = vmatpush1.bf16.msra.mxu0 %v788
        %1023 = vmatprep.subr.bf16.mxu0 %v783
        %1024 = vmatpush1.bf16.msra.mxu0 %v782
        %1025 = vmatprep.subr.bf16.mxu0 %v777
        %1026 = vmatpush1.bf16.msra.mxu0 %v776
        %1027 = vmatprep.subr.bf16.mxu0 %v771
        %1028 = vmatpush1.bf16.msra.mxu0 %v770
        %1029 = vmatprep.subr.bf16.mxu0 %v861
        %1030 = vmatpush2.bf16.msra.mxu0 %v860
        %1031 = vmatprep.subr.bf16.mxu0 %v855
        %1032 = vmatpush2.bf16.msra.mxu0 %v854
        %1033 = vmatprep.subr.bf16.mxu0 %v849
        %1034 = vmatpush2.bf16.msra.mxu0 %v848
        %1035 = vmatprep.subr.bf16.mxu0 %v843
        %1036 = vmatpush2.bf16.msra.mxu0 %v842
        %1037 = vmatprep.subr.bf16.mxu0 %v837
        %1038 = vmatpush2.bf16.msra.mxu0 %v836
        %1039 = vmatprep.subr.bf16.mxu0 %v831
        %1040 = vmatpush2.bf16.msra.mxu0 %v830
        %1041 = vmatprep.subr.bf16.mxu0 %v825
        %1042 = vmatpush2.bf16.msra.mxu0 %v824
        %1043 = vmatprep.subr.bf16.mxu0 %v819
        %1044 = vmatpush2.bf16.msra.mxu0 %v818
        %1045 = vmatprep.mubr.bf16.mxu0 %v473
        %1046 = vmatmul.mubr.bf16.gmra.mxu0 %v472
        %v1047 = vpop.f32.mrf.mxu0
        %v1048 = vadd.f32 %v441, %v1047
        %v1049 = vpop.f32.mrf.mxu0
        %v1050 = vadd.f32 %v445, %v1049
        %v1051 = vpop.f32.mrf.mxu0
        %v1052 = vadd.f32 %v441, %v1051
        %v1053 = vpop.f32.mrf.mxu0
        %v1054 = vadd.f32 %v445, %v1053
        %1055 = vmatprep.mubr.bf16.mxu0 %v475
        %1056 = vmatmul.mubr.bf16.gmra.mxu0 %v474
        %v1057 = vpop.f32.mrf.mxu0
        %v1058 = vadd.f32 %v441, %v1057
        %v1059 = vpop.f32.mrf.mxu0
        %v1060 = vadd.f32 %v445, %v1059
        %v1061 = vpop.f32.mrf.mxu0
        %v1062 = vadd.f32 %v441, %v1061
        %v1063 = vpop.f32.mrf.mxu0
        %v1064 = vadd.f32 %v445, %v1063
        %1065 = vdwg.mxu0
        %1066 = vmatprep.subr.bf16.mxu0 %v815
        %1067 = vmatpush1.bf16.msra.mxu0 %v814
        %1068 = vmatprep.subr.bf16.mxu0 %v809
        %1069 = vmatpush1.bf16.msra.mxu0 %v808
        %1070 = vmatprep.subr.bf16.mxu0 %v803
        %1071 = vmatpush1.bf16.msra.mxu0 %v802
        %1072 = vmatprep.subr.bf16.mxu0 %v797
        %1073 = vmatpush1.bf16.msra.mxu0 %v796
        %1074 = vmatprep.subr.bf16.mxu0 %v791
        %1075 = vmatpush1.bf16.msra.mxu0 %v790
        %1076 = vmatprep.subr.bf16.mxu0 %v785
        %1077 = vmatpush1.bf16.msra.mxu0 %v784
        %1078 = vmatprep.subr.bf16.mxu0 %v779
        %1079 = vmatpush1.bf16.msra.mxu0 %v778
        %1080 = vmatprep.subr.bf16.mxu0 %v773
        %1081 = vmatpush1.bf16.msra.mxu0 %v772
        %1082 = vmatprep.subr.bf16.mxu0 %v863
        %1083 = vmatpush2.bf16.msra.mxu0 %v862
        %1084 = vmatprep.subr.bf16.mxu0 %v857
        %1085 = vmatpush2.bf16.msra.mxu0 %v856
        %1086 = vmatprep.subr.bf16.mxu0 %v851
        %1087 = vmatpush2.bf16.msra.mxu0 %v850
        %1088 = vmatprep.subr.bf16.mxu0 %v845
        %1089 = vmatpush2.bf16.msra.mxu0 %v844
        %1090 = vmatprep.subr.bf16.mxu0 %v839
        %1091 = vmatpush2.bf16.msra.mxu0 %v838
        %1092 = vmatprep.subr.bf16.mxu0 %v833
        %1093 = vmatpush2.bf16.msra.mxu0 %v832
        %1094 = vmatprep.subr.bf16.mxu0 %v827
        %1095 = vmatpush2.bf16.msra.mxu0 %v826
        %1096 = vmatprep.subr.bf16.mxu0 %v821
        %1097 = vmatpush2.bf16.msra.mxu0 %v820
        %1098 = vmatprep.mubr.bf16.mxu0 %v473
        %1099 = vmatmul.mubr.bf16.gmra.mxu0 %v472
        %v1100 = vpop.f32.mrf.mxu0
        %v1101 = vadd.f32 %v449, %v1100
        %v1102 = vpop.f32.mrf.mxu0
        %v1103 = vadd.f32 %v453, %v1102
        %v1104 = vpop.f32.mrf.mxu0
        %v1105 = vadd.f32 %v449, %v1104
        %v1106 = vpop.f32.mrf.mxu0
        %v1107 = vadd.f32 %v453, %v1106
        %1108 = vmatprep.mubr.bf16.mxu0 %v475
        %1109 = vmatmul.mubr.bf16.gmra.mxu0 %v474
        %v1110 = vpop.f32.mrf.mxu0
        %v1111 = vadd.f32 %v449, %v1110
        %v1112 = vpop.f32.mrf.mxu0
        %v1113 = vadd.f32 %v453, %v1112
        %v1114 = vpop.f32.mrf.mxu0
        %v1115 = vadd.f32 %v449, %v1114
        %v1116 = vpop.f32.mrf.mxu0
        %v1117 = vadd.f32 %v453, %v1116
        %1118 = vdwg.mxu0
        %v1119 = vpack.c.bf16 %v999, %v995
        %v1120 = vpack.c.bf16 %v1001, %v997
        %v1121 = vpack.c.bf16 %v1052, %v1048
        %v1122 = vpack.c.bf16 %v1054, %v1050
        %v1123 = vpack.c.bf16 %v1105, %v1101
        %v1124 = vpack.c.bf16 %v1107, %v1103
        %v1125 = vpack.c.bf16 %v1009, %v1005
        %v1126 = vpack.c.bf16 %v1011, %v1007
        %v1127 = vpack.c.bf16 %v1062, %v1058
        %v1128 = vpack.c.bf16 %v1064, %v1060
        %v1129 = vpack.c.bf16 %v1115, %v1111
        %v1130 = vpack.c.bf16 %v1117, %v1113
        %v1131 = vlaneseq
        %v1132 = vand.u32 %v1131, 127
        %vm1133 = vcmp.lt.s32.totalorder %v1132, 20
        %vm1134 = vcmask 523264
        %v1136 = vsel %vm1134, %v1119, 0
        %v1139 = vsel %vm1134, %v1125, 0
        %v1142 = vsel %vm1134, %v1121, 0
        %v1145 = vsel %vm1134, %v1127, 0
        %1147 = vmatprep.subr.bf16.mxu0 0
        %1148 = vmatpush1.bf16.xpose.msra.mxu0 0
        %1149 = vmatprep.subr.bf16.mxu0 0
        %1150 = vmatpush1.bf16.xpose.msra.mxu0 0
        %1151 = vmatprep.subr.bf16.mxu0 0
        %1152 = vmatpush1.bf16.xpose.msra.mxu0 0
        %1153 = vmatprep.subr.bf16.mxu0 0
        %1154 = vmatpush1.bf16.xpose.msra.mxu0 0
        %1155 = vmatprep.subr.bf16.mxu0 0
        %1156 = vmatpush1.bf16.xpose.msra.mxu0 0
        %1157 = vmatprep.subr.bf16.mxu0 0
        %1158 = vmatpush1.bf16.xpose.msra.mxu0 0
        %1159 = vmatprep.subr.bf16.mxu0 0
        %1160 = vmatpush1.bf16.xpose.msra.mxu0 %v1145
        %1161 = vmatprep.subr.bf16.mxu0 0
        %1162 = vmatpush1.bf16.xpose.msra.mxu0 %v1142
        %1163 = vmatprep.subr.bf16.mxu0 0
        %1164 = vmatpush2.bf16.xpose.msra.mxu0 0
        %1165 = vmatprep.subr.bf16.mxu0 0
        %1166 = vmatpush2.bf16.xpose.msra.mxu0 0
        %1167 = vmatprep.subr.bf16.mxu0 0
        %1168 = vmatpush2.bf16.xpose.msra.mxu0 0
        %1169 = vmatprep.subr.bf16.mxu0 0
        %1170 = vmatpush2.bf16.xpose.msra.mxu0 0
        %1171 = vmatprep.subr.bf16.mxu0 0
        %1172 = vmatpush2.bf16.xpose.msra.mxu0 0
        %1173 = vmatprep.subr.bf16.mxu0 0
        %1174 = vmatpush2.bf16.xpose.msra.mxu0 0
        %1175 = vmatprep.subr.bf16.mxu0 0
        %1176 = vmatpush2.bf16.xpose.msra.mxu0 0
        %1177 = vmatprep.subr.bf16.mxu0 0
        %1178 = vmatpush2.bf16.xpose.msra.mxu0 0
        %1179 = vmatprep.mubr.bf16.mxu0 0
        %1180 = vmatmul.mubr.bf16.gmra.mxu0 %v1136
        %v1181 = vpop.f32.mrf.mxu0
        %v1182 = vadd.f32 0.0, %v1181
        %v1183 = vpop.f32.mrf.mxu0
        %v1184 = vpop.f32.mrf.mxu0
        %v1185 = vadd.f32 0.0, %v1184
        %v1186 = vpop.f32.mrf.mxu0
        %1187 = vmatprep.mubr.bf16.mxu0 0
        %1188 = vmatmul.mubr.bf16.gmra.mxu0 %v1139
        %v1189 = vpop.f32.mrf.mxu0
        %v1190 = vadd.f32 0.0, %v1189
        %v1191 = vpop.f32.mrf.mxu0
        %v1192 = vpop.f32.mrf.mxu0
        %v1193 = vadd.f32 0.0, %v1192
        %v1194 = vpop.f32.mrf.mxu0
        %1195 = vdwg.mxu0
        %v1196 = vsel %vm1133, %v1182, -1e+30
        %v1197 = vsel %vm1133, %v1185, -1e+30
        %v1198 = vsel %vm1133, %v1190, -1e+30
        %v1199 = vsel %vm1133, %v1193, -1e+30
        %vm1200 = vcmask 261120
        %v1201 = vsel %vm1200, %v1196, -inf
        %1202 = vmax.xlane.f32.xlu0 %v1201
        %v1203 = vpop.xlane.xlu0 %1202
        %v1204 = vsel %vm1200, %v1197, -inf
        %1205 = vmax.xlane.f32.xlu0 %v1204
        %v1206 = vpop.xlane.xlu0 %1205
        %v1207 = vsel %vm1200, %v1198, -inf
        %1208 = vmax.xlane.f32.xlu0 %v1207
        %v1209 = vpop.xlane.xlu0 %1208
        %v1210 = vsel %vm1200, %v1199, -inf
        %1211 = vmax.xlane.f32.xlu0 %v1210
        %v1212 = vpop.xlane.xlu0 %1211
        %v1213 = vsub.f32 %v1196, %v1203
        %v1214 = vsub.f32 %v1197, %v1206
        %v1215 = vsub.f32 %v1198, %v1209
        %v1216 = vsub.f32 %v1199, %v1212
        %v1217 = vmul.f32 %v1213, 1.442695
        %v1218 = vpow.pop %v1217
        %v1219 = vmul.f32 %v1214, 1.442695
        %v1220 = vpow.pop %v1219
        %v1221 = vmul.f32 %v1215, 1.442695
        %v1222 = vpow.pop %v1221
        %v1223 = vmul.f32 %v1216, 1.442695
        %v1224 = vpow.pop %v1223
        %v1225 = vsel %vm1200, %v1218, 0.0
        %1226 = vadd.xlane.f32.xlu0 %v1225
        %v1227 = vpop.xlane.xlu0 %1226
        %v1228 = vsel %vm1200, %v1220, 0.0
        %1229 = vadd.xlane.f32.xlu0 %v1228
        %v1230 = vpop.xlane.xlu0 %1229
        %v1231 = vsel %vm1200, %v1222, 0.0
        %1232 = vadd.xlane.f32.xlu0 %v1231
        %v1233 = vpop.xlane.xlu0 %1232
        %v1234 = vsel %vm1200, %v1224, 0.0
        %1235 = vadd.xlane.f32.xlu0 %v1234
        %v1236 = vpop.xlane.xlu0 %1235
        %v1237 = vpack.c.bf16 %v1220, %v1218
        %v1238 = vpack.c.bf16 %v1224, %v1222
        %v1240 = vsel %vm1200, %v1237, 0
        %v1243 = vsel %vm1200, %v1238, 0
        %1245 = vmatprep.subr.bf16.mxu0 0
        %1246 = vmatpush1.bf16.msra.mxu0 0
        %1247 = vmatprep.subr.bf16.mxu0 0
        %1248 = vmatpush1.bf16.msra.mxu0 0
        %1249 = vmatprep.subr.bf16.mxu0 0
        %1250 = vmatpush1.bf16.msra.mxu0 0
        %1251 = vmatprep.subr.bf16.mxu0 0
        %1252 = vmatpush1.bf16.msra.mxu0 0
        %1253 = vmatprep.subr.bf16.mxu0 0
        %1254 = vmatpush1.bf16.msra.mxu0 0
        %1255 = vmatprep.subr.bf16.mxu0 0
        %1256 = vmatpush1.bf16.msra.mxu0 0
        %1257 = vmatprep.subr.bf16.mxu0 0
        %1258 = vmatpush1.bf16.msra.mxu0 %v1129
        %1259 = vmatprep.subr.bf16.mxu0 0
        %1260 = vmatpush1.bf16.msra.mxu0 %v1123
        %1261 = vmatprep.subr.bf16.mxu0 0
        %1262 = vmatpush2.bf16.msra.mxu0 0
        %1263 = vmatprep.subr.bf16.mxu0 0
        %1264 = vmatpush2.bf16.msra.mxu0 0
        %1265 = vmatprep.subr.bf16.mxu0 0
        %1266 = vmatpush2.bf16.msra.mxu0 0
        %1267 = vmatprep.subr.bf16.mxu0 0
        %1268 = vmatpush2.bf16.msra.mxu0 0
        %1269 = vmatprep.subr.bf16.mxu0 0
        %1270 = vmatpush2.bf16.msra.mxu0 0
        %1271 = vmatprep.subr.bf16.mxu0 0
        %1272 = vmatpush2.bf16.msra.mxu0 0
        %1273 = vmatprep.subr.bf16.mxu0 0
        %1274 = vmatpush2.bf16.msra.mxu0 0
        %1275 = vmatprep.subr.bf16.mxu0 0
        %1276 = vmatpush2.bf16.msra.mxu0 0
        %1277 = vmatprep.mubr.bf16.mxu0 0
        %1278 = vmatmul.mubr.bf16.gmra.mxu0 %v1240
        %v1279 = vpop.f32.mrf.mxu0
        %v1280 = vadd.f32 0.0, %v1279
        %v1281 = vpop.f32.mrf.mxu0
        %v1282 = vpop.f32.mrf.mxu0
        %v1283 = vadd.f32 0.0, %v1282
        %v1284 = vpop.f32.mrf.mxu0
        %1285 = vmatprep.mubr.bf16.mxu0 0
        %1286 = vmatmul.mubr.bf16.gmra.mxu0 %v1243
        %v1287 = vpop.f32.mrf.mxu0
        %v1288 = vadd.f32 0.0, %v1287
        %v1289 = vpop.f32.mrf.mxu0
        %v1290 = vpop.f32.mrf.mxu0
        %v1291 = vadd.f32 0.0, %v1290
        %v1292 = vpop.f32.mrf.mxu0
        %1293 = vdwg.mxu0
        %v1294 = vrcp.pop %v1227
        %v1295 = vrcp.pop %v1230
        %v1296 = vrcp.pop %v1233
        %v1297 = vrcp.pop %v1236
        %v1298 = vmul.f32 %v1280, %v1294
        %v1299 = vmul.f32 %v1283, %v1295
        %v1300 = vmul.f32 %v1288, %v1296
        %v1301 = vmul.f32 %v1291, %v1297
        %v1302 = vpack.c.bf16 %v1299, %v1298
        %v1303 = vpack.c.bf16 %v1301, %v1300
        %v1306 = vunpack.c.l.b16 %v1302
        %v1307 = vunpack.c.h.b16 %v1302
        %v1308 = vunpack.c.l.b16 %v1303
        %v1309 = vunpack.c.h.b16 %v1303
        %v1310 = vpack.c.b16 %v1306, %v1306
        %v1311 = vpack.c.b16 %v1307, %v1307
        %v1312 = vpack.c.b16 %v1308, %v1308
        %v1313 = vpack.c.b16 %v1309, %v1309
        %vm1318 = vcmask 519168
        %1319 = vst.msk [vmem:[#allocation2] sm:$0xf] %vm1318, %v1310
        %1320 = vst.msk [vmem:[#allocation2 + $0x8] sm:$0xf] %vm1318, %v1311
        %1321 = vst.msk [vmem:[#allocation2 + $0x10] sm:$0xf] %vm1318, %v1312
        %1322 = vst.msk [vmem:[#allocation2 + $0x18] sm:$0xf] %vm1318, %v1313
        %1325 = vrot.lane.b32.xlu0 %v1119, 64
        %v1326 = vpop.permute.xlu0 %1325
        %1327 = vrot.lane.b32.xlu0 %v1125, 64
        %v1328 = vpop.permute.xlu0 %1327
        %1331 = vrot.lane.b32.xlu0 %v1121, 64
        %v1332 = vpop.permute.xlu0 %1331
        %1333 = vrot.lane.b32.xlu0 %v1127, 64
        %v1334 = vpop.permute.xlu0 %1333
        %v1336 = vsel %vm1134, %v1326, 0
        %v1339 = vsel %vm1134, %v1328, 0
        %v1342 = vsel %vm1134, %v1332, 0
        %v1345 = vsel %vm1134, %v1334, 0
        %1347 = vmatprep.subr.bf16.mxu0 0
        %1348 = vmatpush1.bf16.xpose.msra.mxu0 0
        %1349 = vmatprep.subr.bf16.mxu0 0
        %1350 = vmatpush1.bf16.xpose.msra.mxu0 0
        %1351 = vmatprep.subr.bf16.mxu0 0
        %1352 = vmatpush1.bf16.xpose.msra.mxu0 0
        %1353 = vmatprep.subr.bf16.mxu0 0
        %1354 = vmatpush1.bf16.xpose.msra.mxu0 0
        %1355 = vmatprep.subr.bf16.mxu0 0
        %1356 = vmatpush1.bf16.xpose.msra.mxu0 0
        %1357 = vmatprep.subr.bf16.mxu0 0
        %1358 = vmatpush1.bf16.xpose.msra.mxu0 0
        %1359 = vmatprep.subr.bf16.mxu0 0
        %1360 = vmatpush1.bf16.xpose.msra.mxu0 %v1345
        %1361 = vmatprep.subr.bf16.mxu0 0
        %1362 = vmatpush1.bf16.xpose.msra.mxu0 %v1342
        %1363 = vmatprep.subr.bf16.mxu0 0
        %1364 = vmatpush2.bf16.xpose.msra.mxu0 0
        %1365 = vmatprep.subr.bf16.mxu0 0
        %1366 = vmatpush2.bf16.xpose.msra.mxu0 0
        %1367 = vmatprep.subr.bf16.mxu0 0
        %1368 = vmatpush2.bf16.xpose.msra.mxu0 0
        %1369 = vmatprep.subr.bf16.mxu0 0
        %1370 = vmatpush2.bf16.xpose.msra.mxu0 0
        %1371 = vmatprep.subr.bf16.mxu0 0
        %1372 = vmatpush2.bf16.xpose.msra.mxu0 0
        %1373 = vmatprep.subr.bf16.mxu0 0
        %1374 = vmatpush2.bf16.xpose.msra.mxu0 0
        %1375 = vmatprep.subr.bf16.mxu0 0
        %1376 = vmatpush2.bf16.xpose.msra.mxu0 0
        %1377 = vmatprep.subr.bf16.mxu0 0
        %1378 = vmatpush2.bf16.xpose.msra.mxu0 0
        %1379 = vmatprep.mubr.bf16.mxu0 0
        %1380 = vmatmul.mubr.bf16.gmra.mxu0 %v1336
        %v1381 = vpop.f32.mrf.mxu0
        %v1382 = vadd.f32 0.0, %v1381
        %v1383 = vpop.f32.mrf.mxu0
        %v1384 = vpop.f32.mrf.mxu0
        %v1385 = vadd.f32 0.0, %v1384
        %v1386 = vpop.f32.mrf.mxu0
        %1387 = vmatprep.mubr.bf16.mxu0 0
        %1388 = vmatmul.mubr.bf16.gmra.mxu0 %v1339
        %v1389 = vpop.f32.mrf.mxu0
        %v1390 = vadd.f32 0.0, %v1389
        %v1391 = vpop.f32.mrf.mxu0
        %v1392 = vpop.f32.mrf.mxu0
        %v1393 = vadd.f32 0.0, %v1392
        %v1394 = vpop.f32.mrf.mxu0
        %1395 = vdwg.mxu0
        %v1396 = vsel %vm1133, %v1382, -1e+30
        %v1397 = vsel %vm1133, %v1385, -1e+30
        %v1398 = vsel %vm1133, %v1390, -1e+30
        %v1399 = vsel %vm1133, %v1393, -1e+30
        %v1400 = vsel %vm1200, %v1396, -inf
        %1401 = vmax.xlane.f32.xlu0 %v1400
        %v1402 = vpop.xlane.xlu0 %1401
        %v1403 = vsel %vm1200, %v1397, -inf
        %1404 = vmax.xlane.f32.xlu0 %v1403
        %v1405 = vpop.xlane.xlu0 %1404
        %v1406 = vsel %vm1200, %v1398, -inf
        %1407 = vmax.xlane.f32.xlu0 %v1406
        %v1408 = vpop.xlane.xlu0 %1407
        %v1409 = vsel %vm1200, %v1399, -inf
        %1410 = vmax.xlane.f32.xlu0 %v1409
        %v1411 = vpop.xlane.xlu0 %1410
        %v1412 = vsub.f32 %v1396, %v1402
        %v1413 = vsub.f32 %v1397, %v1405
        %v1414 = vsub.f32 %v1398, %v1408
        %v1415 = vsub.f32 %v1399, %v1411
        %v1416 = vmul.f32 %v1412, 1.442695
        %v1417 = vpow.pop %v1416
        %v1418 = vmul.f32 %v1413, 1.442695
        %v1419 = vpow.pop %v1418
        %v1420 = vmul.f32 %v1414, 1.442695
        %v1421 = vpow.pop %v1420
        %v1422 = vmul.f32 %v1415, 1.442695
        %v1423 = vpow.pop %v1422
        %v1424 = vsel %vm1200, %v1417, 0.0
        %1425 = vadd.xlane.f32.xlu0 %v1424
        %v1426 = vpop.xlane.xlu0 %1425
        %v1427 = vsel %vm1200, %v1419, 0.0
        %1428 = vadd.xlane.f32.xlu0 %v1427
        %v1429 = vpop.xlane.xlu0 %1428
        %v1430 = vsel %vm1200, %v1421, 0.0
        %1431 = vadd.xlane.f32.xlu0 %v1430
        %v1432 = vpop.xlane.xlu0 %1431
        %v1433 = vsel %vm1200, %v1423, 0.0
        %1434 = vadd.xlane.f32.xlu0 %v1433
        %v1435 = vpop.xlane.xlu0 %1434
        %v1436 = vpack.c.bf16 %v1419, %v1417
        %v1437 = vpack.c.bf16 %v1423, %v1421
        %1440 = vrot.lane.b32.xlu0 %v1123, 64
        %v1441 = vpop.permute.xlu0 %1440
        %1442 = vrot.lane.b32.xlu0 %v1129, 64
        %v1443 = vpop.permute.xlu0 %1442
        %v1447 = vsel %vm1200, %v1436, 0
        %v1450 = vsel %vm1200, %v1437, 0
        %1452 = vmatprep.subr.bf16.mxu0 0
        %1453 = vmatpush1.bf16.msra.mxu0 0
        %1454 = vmatprep.subr.bf16.mxu0 0
        %1455 = vmatpush1.bf16.msra.mxu0 0
        %1456 = vmatprep.subr.bf16.mxu0 0
        %1457 = vmatpush1.bf16.msra.mxu0 0
        %1458 = vmatprep.subr.bf16.mxu0 0
        %1459 = vmatpush1.bf16.msra.mxu0 0
        %1460 = vmatprep.subr.bf16.mxu0 0
        %1461 = vmatpush1.bf16.msra.mxu0 0
        %1462 = vmatprep.subr.bf16.mxu0 0
        %1463 = vmatpush1.bf16.msra.mxu0 0
        %1464 = vmatprep.subr.bf16.mxu0 0
        %1465 = vmatpush1.bf16.msra.mxu0 %v1443
        %1466 = vmatprep.subr.bf16.mxu0 0
        %1467 = vmatpush1.bf16.msra.mxu0 %v1441
        %1468 = vmatprep.subr.bf16.mxu0 0
        %1469 = vmatpush2.bf16.msra.mxu0 0
        %1470 = vmatprep.subr.bf16.mxu0 0
        %1471 = vmatpush2.bf16.msra.mxu0 0
        %1472 = vmatprep.subr.bf16.mxu0 0
        %1473 = vmatpush2.bf16.msra.mxu0 0
        %1474 = vmatprep.subr.bf16.mxu0 0
        %1475 = vmatpush2.bf16.msra.mxu0 0
        %1476 = vmatprep.subr.bf16.mxu0 0
        %1477 = vmatpush2.bf16.msra.mxu0 0
        %1478 = vmatprep.subr.bf16.mxu0 0
        %1479 = vmatpush2.bf16.msra.mxu0 0
        %1480 = vmatprep.subr.bf16.mxu0 0
        %1481 = vmatpush2.bf16.msra.mxu0 0
        %1482 = vmatprep.subr.bf16.mxu0 0
        %1483 = vmatpush2.bf16.msra.mxu0 0
        %1484 = vmatprep.mubr.bf16.mxu0 0
        %1485 = vmatmul.mubr.bf16.gmra.mxu0 %v1447
        %v1486 = vpop.f32.mrf.mxu0
        %v1487 = vadd.f32 0.0, %v1486
        %v1488 = vpop.f32.mrf.mxu0
        %v1489 = vpop.f32.mrf.mxu0
        %v1490 = vadd.f32 0.0, %v1489
        %v1491 = vpop.f32.mrf.mxu0
        %1492 = vmatprep.mubr.bf16.mxu0 0
        %1493 = vmatmul.mubr.bf16.gmra.mxu0 %v1450
        %v1494 = vpop.f32.mrf.mxu0
        %v1495 = vadd.f32 0.0, %v1494
        %v1496 = vpop.f32.mrf.mxu0
        %v1497 = vpop.f32.mrf.mxu0
        %v1498 = vadd.f32 0.0, %v1497
        %v1499 = vpop.f32.mrf.mxu0
        %1500 = vdwg.mxu0
        %v1501 = vrcp.pop %v1426
        %v1502 = vrcp.pop %v1429
        %v1503 = vrcp.pop %v1432
        %v1504 = vrcp.pop %v1435
        %v1505 = vmul.f32 %v1487, %v1501
        %v1506 = vmul.f32 %v1490, %v1502
        %v1507 = vmul.f32 %v1495, %v1503
        %v1508 = vmul.f32 %v1498, %v1504
        %v1509 = vpack.c.bf16 %v1506, %v1505
        %v1510 = vpack.c.bf16 %v1508, %v1507
        %v1513 = vunpack.c.l.b16 %v1509
        %v1514 = vunpack.c.h.b16 %v1509
        %v1515 = vunpack.c.l.b16 %v1510
        %v1516 = vunpack.c.h.b16 %v1510
        %v1517 = vpack.c.b16 %v1513, %v1513
        %v1518 = vpack.c.b16 %v1514, %v1514
        %v1519 = vpack.c.b16 %v1515, %v1515
        %v1520 = vpack.c.b16 %v1516, %v1516
        %1521 = vrot.lane.b32.xlu0 %v1517, 64
        %v1522 = vpop.permute.xlu0 %1521
        %1523 = vrot.lane.b32.xlu0 %v1518, 64
        %v1524 = vpop.permute.xlu0 %1523
        %1525 = vrot.lane.b32.xlu0 %v1519, 64
        %v1526 = vpop.permute.xlu0 %1525
        %1527 = vrot.lane.b32.xlu0 %v1520, 64
        %v1528 = vpop.permute.xlu0 %1527
        %vm1533 = vcmask 1043968
        %1534 = vst.msk [vmem:[#allocation2] sm:$0xf] %vm1533, %v1522
        %1535 = vst.msk [vmem:[#allocation2 + $0x8] sm:$0xf] %vm1533, %v1524
        %1536 = vst.msk [vmem:[#allocation2 + $0x10] sm:$0xf] %vm1533, %v1526
        %1537 = vst.msk [vmem:[#allocation2 + $0x18] sm:$0xf] %vm1533, %v1528
        %v1539 = vsel %vm1134, %v1120, 0
        %v1542 = vsel %vm1134, %v1126, 0
        %v1545 = vsel %vm1134, %v1122, 0
        %v1548 = vsel %vm1134, %v1128, 0
        %1550 = vmatprep.subr.bf16.mxu0 0
        %1551 = vmatpush1.bf16.xpose.msra.mxu0 0
        %1552 = vmatprep.subr.bf16.mxu0 0
        %1553 = vmatpush1.bf16.xpose.msra.mxu0 0
        %1554 = vmatprep.subr.bf16.mxu0 0
        %1555 = vmatpush1.bf16.xpose.msra.mxu0 0
        %1556 = vmatprep.subr.bf16.mxu0 0
        %1557 = vmatpush1.bf16.xpose.msra.mxu0 0
        %1558 = vmatprep.subr.bf16.mxu0 0
        %1559 = vmatpush1.bf16.xpose.msra.mxu0 0
        %1560 = vmatprep.subr.bf16.mxu0 0
        %1561 = vmatpush1.bf16.xpose.msra.mxu0 0
        %1562 = vmatprep.subr.bf16.mxu0 0
        %1563 = vmatpush1.bf16.xpose.msra.mxu0 %v1548
        %1564 = vmatprep.subr.bf16.mxu0 0
        %1565 = vmatpush1.bf16.xpose.msra.mxu0 %v1545
        %1566 = vmatprep.subr.bf16.mxu0 0
        %1567 = vmatpush2.bf16.xpose.msra.mxu0 0
        %1568 = vmatprep.subr.bf16.mxu0 0
        %1569 = vmatpush2.bf16.xpose.msra.mxu0 0
        %1570 = vmatprep.subr.bf16.mxu0 0
        %1571 = vmatpush2.bf16.xpose.msra.mxu0 0
        %1572 = vmatprep.subr.bf16.mxu0 0
        %1573 = vmatpush2.bf16.xpose.msra.mxu0 0
        %1574 = vmatprep.subr.bf16.mxu0 0
        %1575 = vmatpush2.bf16.xpose.msra.mxu0 0
        %1576 = vmatprep.subr.bf16.mxu0 0
        %1577 = vmatpush2.bf16.xpose.msra.mxu0 0
        %1578 = vmatprep.subr.bf16.mxu0 0
        %1579 = vmatpush2.bf16.xpose.msra.mxu0 0
        %1580 = vmatprep.subr.bf16.mxu0 0
        %1581 = vmatpush2.bf16.xpose.msra.mxu0 0
        %1582 = vmatprep.mubr.bf16.mxu0 0
        %1583 = vmatmul.mubr.bf16.gmra.mxu0 %v1539
        %v1584 = vpop.f32.mrf.mxu0
        %v1585 = vadd.f32 0.0, %v1584
        %v1586 = vpop.f32.mrf.mxu0
        %v1587 = vpop.f32.mrf.mxu0
        %v1588 = vadd.f32 0.0, %v1587
        %v1589 = vpop.f32.mrf.mxu0
        %1590 = vmatprep.mubr.bf16.mxu0 0
        %1591 = vmatmul.mubr.bf16.gmra.mxu0 %v1542
        %v1592 = vpop.f32.mrf.mxu0
        %v1593 = vadd.f32 0.0, %v1592
        %v1594 = vpop.f32.mrf.mxu0
        %v1595 = vpop.f32.mrf.mxu0
        %v1596 = vadd.f32 0.0, %v1595
        %v1597 = vpop.f32.mrf.mxu0
        %1598 = vdwg.mxu0
        %v1599 = vsel %vm1133, %v1585, -1e+30
        %v1600 = vsel %vm1133, %v1588, -1e+30
        %v1601 = vsel %vm1133, %v1593, -1e+30
        %v1602 = vsel %vm1133, %v1596, -1e+30
        %v1603 = vsel %vm1200, %v1599, -inf
        %1604 = vmax.xlane.f32.xlu0 %v1603
        %v1605 = vpop.xlane.xlu0 %1604
        %v1606 = vsel %vm1200, %v1600, -inf
        %1607 = vmax.xlane.f32.xlu0 %v1606
        %v1608 = vpop.xlane.xlu0 %1607
        %v1609 = vsel %vm1200, %v1601, -inf
        %1610 = vmax.xlane.f32.xlu0 %v1609
        %v1611 = vpop.xlane.xlu0 %1610
        %v1612 = vsel %vm1200, %v1602, -inf
        %1613 = vmax.xlane.f32.xlu0 %v1612
        %v1614 = vpop.xlane.xlu0 %1613
        %v1615 = vsub.f32 %v1599, %v1605
        %v1616 = vsub.f32 %v1600, %v1608
        %v1617 = vsub.f32 %v1601, %v1611
        %v1618 = vsub.f32 %v1602, %v1614
        %v1619 = vmul.f32 %v1615, 1.442695
        %v1620 = vpow.pop %v1619
        %v1621 = vmul.f32 %v1616, 1.442695
        %v1622 = vpow.pop %v1621
        %v1623 = vmul.f32 %v1617, 1.442695
        %v1624 = vpow.pop %v1623
        %v1625 = vmul.f32 %v1618, 1.442695
        %v1626 = vpow.pop %v1625
        %v1627 = vsel %vm1200, %v1620, 0.0
        %1628 = vadd.xlane.f32.xlu0 %v1627
        %v1629 = vpop.xlane.xlu0 %1628
        %v1630 = vsel %vm1200, %v1622, 0.0
        %1631 = vadd.xlane.f32.xlu0 %v1630
        %v1632 = vpop.xlane.xlu0 %1631
        %v1633 = vsel %vm1200, %v1624, 0.0
        %1634 = vadd.xlane.f32.xlu0 %v1633
        %v1635 = vpop.xlane.xlu0 %1634
        %v1636 = vsel %vm1200, %v1626, 0.0
        %1637 = vadd.xlane.f32.xlu0 %v1636
        %v1638 = vpop.xlane.xlu0 %1637
        %v1639 = vpack.c.bf16 %v1622, %v1620
        %v1640 = vpack.c.bf16 %v1626, %v1624
        %v1642 = vsel %vm1200, %v1639, 0
        %v1645 = vsel %vm1200, %v1640, 0
        %1647 = vmatprep.subr.bf16.mxu0 0
        %1648 = vmatpush1.bf16.msra.mxu0 0
        %1649 = vmatprep.subr.bf16.mxu0 0
        %1650 = vmatpush1.bf16.msra.mxu0 0
        %1651 = vmatprep.subr.bf16.mxu0 0
        %1652 = vmatpush1.bf16.msra.mxu0 0
        %1653 = vmatprep.subr.bf16.mxu0 0
        %1654 = vmatpush1.bf16.msra.mxu0 0
        %1655 = vmatprep.subr.bf16.mxu0 0
        %1656 = vmatpush1.bf16.msra.mxu0 0
        %1657 = vmatprep.subr.bf16.mxu0 0
        %1658 = vmatpush1.bf16.msra.mxu0 0
        %1659 = vmatprep.subr.bf16.mxu0 0
        %1660 = vmatpush1.bf16.msra.mxu0 %v1130
        %1661 = vmatprep.subr.bf16.mxu0 0
        %1662 = vmatpush1.bf16.msra.mxu0 %v1124
        %1663 = vmatprep.subr.bf16.mxu0 0
        %1664 = vmatpush2.bf16.msra.mxu0 0
        %1665 = vmatprep.subr.bf16.mxu0 0
        %1666 = vmatpush2.bf16.msra.mxu0 0
        %1667 = vmatprep.subr.bf16.mxu0 0
        %1668 = vmatpush2.bf16.msra.mxu0 0
        %1669 = vmatprep.subr.bf16.mxu0 0
        %1670 = vmatpush2.bf16.msra.mxu0 0
        %1671 = vmatprep.subr.bf16.mxu0 0
        %1672 = vmatpush2.bf16.msra.mxu0 0
        %1673 = vmatprep.subr.bf16.mxu0 0
        %1674 = vmatpush2.bf16.msra.mxu0 0
        %1675 = vmatprep.subr.bf16.mxu0 0
        %1676 = vmatpush2.bf16.msra.mxu0 0
        %1677 = vmatprep.subr.bf16.mxu0 0
        %1678 = vmatpush2.bf16.msra.mxu0 0
        %1679 = vmatprep.mubr.bf16.mxu0 0
        %1680 = vmatmul.mubr.bf16.gmra.mxu0 %v1642
        %v1681 = vpop.f32.mrf.mxu0
        %v1682 = vadd.f32 0.0, %v1681
        %v1683 = vpop.f32.mrf.mxu0
        %v1684 = vpop.f32.mrf.mxu0
        %v1685 = vadd.f32 0.0, %v1684
        %v1686 = vpop.f32.mrf.mxu0
        %1687 = vmatprep.mubr.bf16.mxu0 0
        %1688 = vmatmul.mubr.bf16.gmra.mxu0 %v1645
        %v1689 = vpop.f32.mrf.mxu0
        %v1690 = vadd.f32 0.0, %v1689
        %v1691 = vpop.f32.mrf.mxu0
        %v1692 = vpop.f32.mrf.mxu0
        %v1693 = vadd.f32 0.0, %v1692
        %v1694 = vpop.f32.mrf.mxu0
        %1695 = vdwg.mxu0
        %v1696 = vrcp.pop %v1629
        %v1697 = vrcp.pop %v1632
        %v1698 = vrcp.pop %v1635
        %v1699 = vrcp.pop %v1638
        %v1700 = vmul.f32 %v1682, %v1696
        %v1701 = vmul.f32 %v1685, %v1697
        %v1702 = vmul.f32 %v1690, %v1698
        %v1703 = vmul.f32 %v1693, %v1699
        %v1704 = vpack.c.bf16 %v1701, %v1700
        %v1705 = vpack.c.bf16 %v1703, %v1702
        %v1708 = vunpack.c.l.b16 %v1704
        %v1709 = vunpack.c.h.b16 %v1704
        %v1710 = vunpack.c.l.b16 %v1705
        %v1711 = vunpack.c.h.b16 %v1705
        %v1712 = vpack.c.b16 %v1708, %v1708
        %v1713 = vpack.c.b16 %v1709, %v1709
        %v1714 = vpack.c.b16 %v1710, %v1710
        %v1715 = vpack.c.b16 %v1711, %v1711
        %1720 = vst.msk [vmem:[#allocation2 + $0x4] sm:$0xf] %vm1318, %v1712
        %1721 = vst.msk [vmem:[#allocation2 + $0xc] sm:$0xf] %vm1318, %v1713
        %1722 = vst.msk [vmem:[#allocation2 + $0x14] sm:$0xf] %vm1318, %v1714
        %1723 = vst.msk [vmem:[#allocation2 + $0x1c] sm:$0xf] %vm1318, %v1715
        %1726 = vrot.lane.b32.xlu0 %v1120, 64
        %v1727 = vpop.permute.xlu0 %1726
        %1728 = vrot.lane.b32.xlu0 %v1126, 64
        %v1729 = vpop.permute.xlu0 %1728
        %1732 = vrot.lane.b32.xlu0 %v1122, 64
        %v1733 = vpop.permute.xlu0 %1732
        %1734 = vrot.lane.b32.xlu0 %v1128, 64
        %v1735 = vpop.permute.xlu0 %1734
        %v1737 = vsel %vm1134, %v1727, 0
        %v1740 = vsel %vm1134, %v1729, 0
        %v1743 = vsel %vm1134, %v1733, 0
        %v1746 = vsel %vm1134, %v1735, 0
        %1748 = vmatprep.subr.bf16.mxu0 0
        %1749 = vmatpush1.bf16.xpose.msra.mxu0 0
        %1750 = vmatprep.subr.bf16.mxu0 0
        %1751 = vmatpush1.bf16.xpose.msra.mxu0 0
        %1752 = vmatprep.subr.bf16.mxu0 0
        %1753 = vmatpush1.bf16.xpose.msra.mxu0 0
        %1754 = vmatprep.subr.bf16.mxu0 0
        %1755 = vmatpush1.bf16.xpose.msra.mxu0 0
        %1756 = vmatprep.subr.bf16.mxu0 0
        %1757 = vmatpush1.bf16.xpose.msra.mxu0 0
        %1758 = vmatprep.subr.bf16.mxu0 0
        %1759 = vmatpush1.bf16.xpose.msra.mxu0 0
        %1760 = vmatprep.subr.bf16.mxu0 0
        %1761 = vmatpush1.bf16.xpose.msra.mxu0 %v1746
        %1762 = vmatprep.subr.bf16.mxu0 0
        %1763 = vmatpush1.bf16.xpose.msra.mxu0 %v1743
        %1764 = vmatprep.subr.bf16.mxu0 0
        %1765 = vmatpush2.bf16.xpose.msra.mxu0 0
        %1766 = vmatprep.subr.bf16.mxu0 0
        %1767 = vmatpush2.bf16.xpose.msra.mxu0 0
        %1768 = vmatprep.subr.bf16.mxu0 0
        %1769 = vmatpush2.bf16.xpose.msra.mxu0 0
        %1770 = vmatprep.subr.bf16.mxu0 0
        %1771 = vmatpush2.bf16.xpose.msra.mxu0 0
        %1772 = vmatprep.subr.bf16.mxu0 0
        %1773 = vmatpush2.bf16.xpose.msra.mxu0 0
        %1774 = vmatprep.subr.bf16.mxu0 0
        %1775 = vmatpush2.bf16.xpose.msra.mxu0 0
        %1776 = vmatprep.subr.bf16.mxu0 0
        %1777 = vmatpush2.bf16.xpose.msra.mxu0 0
        %1778 = vmatprep.subr.bf16.mxu0 0
        %1779 = vmatpush2.bf16.xpose.msra.mxu0 0
        %1780 = vmatprep.mubr.bf16.mxu0 0
        %1781 = vmatmul.mubr.bf16.gmra.mxu0 %v1737
        %v1782 = vpop.f32.mrf.mxu0
        %v1783 = vadd.f32 0.0, %v1782
        %v1784 = vpop.f32.mrf.mxu0
        %v1785 = vpop.f32.mrf.mxu0
        %v1786 = vadd.f32 0.0, %v1785
        %v1787 = vpop.f32.mrf.mxu0
        %1788 = vmatprep.mubr.bf16.mxu0 0
        %1789 = vmatmul.mubr.bf16.gmra.mxu0 %v1740
        %v1790 = vpop.f32.mrf.mxu0
        %v1791 = vadd.f32 0.0, %v1790
        %v1792 = vpop.f32.mrf.mxu0
        %v1793 = vpop.f32.mrf.mxu0
        %v1794 = vadd.f32 0.0, %v1793
        %v1795 = vpop.f32.mrf.mxu0
        %1796 = vdwg.mxu0
        %v1797 = vsel %vm1133, %v1783, -1e+30
        %v1798 = vsel %vm1133, %v1786, -1e+30
        %v1799 = vsel %vm1133, %v1791, -1e+30
        %v1800 = vsel %vm1133, %v1794, -1e+30
        %v1801 = vsel %vm1200, %v1797, -inf
        %1802 = vmax.xlane.f32.xlu0 %v1801
        %v1803 = vpop.xlane.xlu0 %1802
        %v1804 = vsel %vm1200, %v1798, -inf
        %1805 = vmax.xlane.f32.xlu0 %v1804
        %v1806 = vpop.xlane.xlu0 %1805
        %v1807 = vsel %vm1200, %v1799, -inf
        %1808 = vmax.xlane.f32.xlu0 %v1807
        %v1809 = vpop.xlane.xlu0 %1808
        %v1810 = vsel %vm1200, %v1800, -inf
        %1811 = vmax.xlane.f32.xlu0 %v1810
        %v1812 = vpop.xlane.xlu0 %1811
        %v1813 = vsub.f32 %v1797, %v1803
        %v1814 = vsub.f32 %v1798, %v1806
        %v1815 = vsub.f32 %v1799, %v1809
        %v1816 = vsub.f32 %v1800, %v1812
        %v1817 = vmul.f32 %v1813, 1.442695
        %v1818 = vpow.pop %v1817
        %v1819 = vmul.f32 %v1814, 1.442695
        %v1820 = vpow.pop %v1819
        %v1821 = vmul.f32 %v1815, 1.442695
        %v1822 = vpow.pop %v1821
        %v1823 = vmul.f32 %v1816, 1.442695
        %v1824 = vpow.pop %v1823
        %v1825 = vsel %vm1200, %v1818, 0.0
        %1826 = vadd.xlane.f32.xlu0 %v1825
        %v1827 = vpop.xlane.xlu0 %1826
        %v1828 = vsel %vm1200, %v1820, 0.0
        %1829 = vadd.xlane.f32.xlu0 %v1828
        %v1830 = vpop.xlane.xlu0 %1829
        %v1831 = vsel %vm1200, %v1822, 0.0
        %1832 = vadd.xlane.f32.xlu0 %v1831
        %v1833 = vpop.xlane.xlu0 %1832
        %v1834 = vsel %vm1200, %v1824, 0.0
        %1835 = vadd.xlane.f32.xlu0 %v1834
        %v1836 = vpop.xlane.xlu0 %1835
        %v1837 = vpack.c.bf16 %v1820, %v1818
        %v1838 = vpack.c.bf16 %v1824, %v1822
        %1841 = vrot.lane.b32.xlu0 %v1124, 64
        %v1842 = vpop.permute.xlu0 %1841
        %1843 = vrot.lane.b32.xlu0 %v1130, 64
        %v1844 = vpop.permute.xlu0 %1843
        %v1848 = vsel %vm1200, %v1837, 0
        %v1851 = vsel %vm1200, %v1838, 0
        %1853 = vmatprep.subr.bf16.mxu0 0
        %1854 = vmatpush1.bf16.msra.mxu0 0
        %1855 = vmatprep.subr.bf16.mxu0 0
        %1856 = vmatpush1.bf16.msra.mxu0 0
        %1857 = vmatprep.subr.bf16.mxu0 0
        %1858 = vmatpush1.bf16.msra.mxu0 0
        %1859 = vmatprep.subr.bf16.mxu0 0
        %1860 = vmatpush1.bf16.msra.mxu0 0
        %1861 = vmatprep.subr.bf16.mxu0 0
        %1862 = vmatpush1.bf16.msra.mxu0 0
        %1863 = vmatprep.subr.bf16.mxu0 0
        %1864 = vmatpush1.bf16.msra.mxu0 0
        %1865 = vmatprep.subr.bf16.mxu0 0
        %1866 = vmatpush1.bf16.msra.mxu0 %v1844
        %1867 = vmatprep.subr.bf16.mxu0 0
        %1868 = vmatpush1.bf16.msra.mxu0 %v1842
        %1869 = vmatprep.subr.bf16.mxu0 0
        %1870 = vmatpush2.bf16.msra.mxu0 0
        %1871 = vmatprep.subr.bf16.mxu0 0
        %1872 = vmatpush2.bf16.msra.mxu0 0
        %1873 = vmatprep.subr.bf16.mxu0 0
        %1874 = vmatpush2.bf16.msra.mxu0 0
        %1875 = vmatprep.subr.bf16.mxu0 0
        %1876 = vmatpush2.bf16.msra.mxu0 0
        %1877 = vmatprep.subr.bf16.mxu0 0
        %1878 = vmatpush2.bf16.msra.mxu0 0
        %1879 = vmatprep.subr.bf16.mxu0 0
        %1880 = vmatpush2.bf16.msra.mxu0 0
        %1881 = vmatprep.subr.bf16.mxu0 0
        %1882 = vmatpush2.bf16.msra.mxu0 0
        %1883 = vmatprep.subr.bf16.mxu0 0
        %1884 = vmatpush2.bf16.msra.mxu0 0
        %1885 = vmatprep.mubr.bf16.mxu0 0
        %1886 = vmatmul.mubr.bf16.gmra.mxu0 %v1848
        %v1887 = vpop.f32.mrf.mxu0
        %v1888 = vadd.f32 0.0, %v1887
        %v1889 = vpop.f32.mrf.mxu0
        %v1890 = vpop.f32.mrf.mxu0
        %v1891 = vadd.f32 0.0, %v1890
        %v1892 = vpop.f32.mrf.mxu0
        %1893 = vmatprep.mubr.bf16.mxu0 0
        %1894 = vmatmul.mubr.bf16.gmra.mxu0 %v1851
        %v1895 = vpop.f32.mrf.mxu0
        %v1896 = vadd.f32 0.0, %v1895
        %v1897 = vpop.f32.mrf.mxu0
        %v1898 = vpop.f32.mrf.mxu0
        %v1899 = vadd.f32 0.0, %v1898
        %v1900 = vpop.f32.mrf.mxu0
        %1901 = vdwg.mxu0
        %v1902 = vrcp.pop %v1827
        %v1903 = vrcp.pop %v1830
        %v1904 = vrcp.pop %v1833
        %v1905 = vrcp.pop %v1836
        %v1906 = vmul.f32 %v1888, %v1902
        %v1907 = vmul.f32 %v1891, %v1903
        %v1908 = vmul.f32 %v1896, %v1904
        %v1909 = vmul.f32 %v1899, %v1905
        %v1910 = vpack.c.bf16 %v1907, %v1906
        %v1911 = vpack.c.bf16 %v1909, %v1908
        %v1914 = vunpack.c.l.b16 %v1910
        %v1915 = vunpack.c.h.b16 %v1910
        %v1916 = vunpack.c.l.b16 %v1911
        %v1917 = vunpack.c.h.b16 %v1911
        %v1918 = vpack.c.b16 %v1914, %v1914
        %v1919 = vpack.c.b16 %v1915, %v1915
        %v1920 = vpack.c.b16 %v1916, %v1916
        %v1921 = vpack.c.b16 %v1917, %v1917
        %1922 = vrot.lane.b32.xlu0 %v1918, 64
        %v1923 = vpop.permute.xlu0 %1922
        %1924 = vrot.lane.b32.xlu0 %v1919, 64
        %v1925 = vpop.permute.xlu0 %1924
        %1926 = vrot.lane.b32.xlu0 %v1920, 64
        %v1927 = vpop.permute.xlu0 %1926
        %1928 = vrot.lane.b32.xlu0 %v1921, 64
        %v1929 = vpop.permute.xlu0 %1928
        %1934 = vst.msk [vmem:[#allocation2 + $0x4] sm:$0xf] %vm1533, %v1923
        %1935 = vst.msk [vmem:[#allocation2 + $0xc] sm:$0xf] %vm1533, %v1925
        %1936 = vst.msk [vmem:[#allocation2 + $0x14] sm:$0xf] %vm1533, %v1927
        %1937 = vst.msk [vmem:[#allocation2 + $0x1c] sm:$0xf] %vm1533, %v1929
        %v1938 = vld [vmem:[#allocation2] sm:$0xff]
        %v1939 = vld [vmem:[#allocation2 + $0x8] sm:$0xff]
        %v1940 = vld [vmem:[#allocation2 + $0x10] sm:$0xff]
        %v1941 = vld [vmem:[#allocation2 + $0x18] sm:$0xff]
        %v1942 = vld [vmem:[#allocation9] sm:$0xff]
        %v1943 = vld [vmem:[#allocation9 + $0x8] sm:$0xff]
        %v1944 = vld [vmem:[#allocation9 + $0x10] sm:$0xff]
        %v1945 = vld [vmem:[#allocation9 + $0x18] sm:$0xff]
        %v1946 = vld [vmem:[#allocation9 + $0x20] sm:$0xff]
        %v1947 = vld [vmem:[#allocation9 + $0x28] sm:$0xff]
        %v1948 = vld [vmem:[#allocation9 + $0x30] sm:$0xff]
        %v1949 = vld [vmem:[#allocation9 + $0x38] sm:$0xff]
        %v1950 = vld [vmem:[#allocation9 + $0x40] sm:$0xff]
        %v1951 = vld [vmem:[#allocation9 + $0x48] sm:$0xff]
        %v1952 = vld [vmem:[#allocation9 + $0x50] sm:$0xff]
        %v1953 = vld [vmem:[#allocation9 + $0x58] sm:$0xff]
        %v1954 = vld [vmem:[#allocation9 + $0x60] sm:$0xff]
        %v1955 = vld [vmem:[#allocation9 + $0x68] sm:$0xff]
        %v1956 = vld [vmem:[#allocation9 + $0x70] sm:$0xff]
        %v1957 = vld [vmem:[#allocation9 + $0x78] sm:$0xff]
        %v1958 = vld [vmem:[#allocation9 + $0x80] sm:$0xff]
        %v1959 = vld [vmem:[#allocation9 + $0x88] sm:$0xff]
        %v1960 = vld [vmem:[#allocation9 + $0x90] sm:$0xff]
        %v1961 = vld [vmem:[#allocation9 + $0x98] sm:$0xff]
        %v1962 = vld [vmem:[#allocation9 + $0xa0] sm:$0xff]
        %v1963 = vld [vmem:[#allocation9 + $0xa8] sm:$0xff]
        %v1964 = vld [vmem:[#allocation9 + $0xb0] sm:$0xff]
        %v1965 = vld [vmem:[#allocation9 + $0xb8] sm:$0xff]
        %v1966 = vld [vmem:[#allocation9 + $0xc0] sm:$0xff]
        %v1967 = vld [vmem:[#allocation9 + $0xc8] sm:$0xff]
        %v1968 = vld [vmem:[#allocation9 + $0xd0] sm:$0xff]
        %v1969 = vld [vmem:[#allocation9 + $0xd8] sm:$0xff]
        %v1970 = vld [vmem:[#allocation9 + $0xe0] sm:$0xff]
        %v1971 = vld [vmem:[#allocation9 + $0xe8] sm:$0xff]
        %v1972 = vld [vmem:[#allocation9 + $0xf0] sm:$0xff]
        %v1973 = vld [vmem:[#allocation9 + $0xf8] sm:$0xff]
        %v1974 = vld [vmem:[%s4] sm:$0x3]
        %v1976 = vlaneseq
        %v1977 = vshrl.u32 %v1976, 7
        %v1978 = vsub.s32 0, %v1977
        %v1979 = vrot.slane %v1974, %v1978
        %v1980 = vlaneseq
        %v1981 = vshrl.u32 %v1980, 7
        %v1982 = vsub.s32 1, %v1981
        %v1983 = vrot.slane %v1974, %v1982
        %v1990 = vunpack.c.l.b16 %v1938
        %v1991 = vunpack.c.h.b16 %v1938
        %v1992 = vunpack.c.l.b16 %v1939
        %v1993 = vunpack.c.h.b16 %v1939
        %v1994 = vunpack.c.l.b16 %v1940
        %v1995 = vunpack.c.h.b16 %v1940
        %v1996 = vunpack.c.l.b16 %v1941
        %v1997 = vunpack.c.h.b16 %v1941
        %v1998 = vpack.c.b16 %v1992, %v1990
        %v1999 = vpack.c.b16 %v1993, %v1991
        %v2000 = vpack.c.b16 %v1996, %v1994
        %v2001 = vpack.c.b16 %v1997, %v1995
        %v2038 = vunpack.c.l.b16 %v1942
        %v2039 = vunpack.c.h.b16 %v1942
        %v2040 = vunpack.c.l.b16 %v1943
        %v2041 = vunpack.c.h.b16 %v1943
        %v2042 = vunpack.c.l.b16 %v1944
        %v2043 = vunpack.c.h.b16 %v1944
        %v2044 = vunpack.c.l.b16 %v1945
        %v2045 = vunpack.c.h.b16 %v1945
        %v2046 = vunpack.c.l.b16 %v1946
        %v2047 = vunpack.c.h.b16 %v1946
        %v2048 = vunpack.c.l.b16 %v1947
        %v2049 = vunpack.c.h.b16 %v1947
        %v2050 = vunpack.c.l.b16 %v1948
        %v2051 = vunpack.c.h.b16 %v1948
        %v2052 = vunpack.c.l.b16 %v1949
        %v2053 = vunpack.c.h.b16 %v1949
        %v2054 = vunpack.c.l.b16 %v1950
        %v2055 = vunpack.c.h.b16 %v1950
        %v2056 = vunpack.c.l.b16 %v1951
        %v2057 = vunpack.c.h.b16 %v1951
        %v2058 = vunpack.c.l.b16 %v1952
        %v2059 = vunpack.c.h.b16 %v1952
        %v2060 = vunpack.c.l.b16 %v1953
        %v2061 = vunpack.c.h.b16 %v1953
        %v2062 = vunpack.c.l.b16 %v1954
        %v2063 = vunpack.c.h.b16 %v1954
        %v2064 = vunpack.c.l.b16 %v1955
        %v2065 = vunpack.c.h.b16 %v1955
        %v2066 = vunpack.c.l.b16 %v1956
        %v2067 = vunpack.c.h.b16 %v1956
        %v2068 = vunpack.c.l.b16 %v1957
        %v2069 = vunpack.c.h.b16 %v1957
        %v2070 = vunpack.c.l.b16 %v1958
        %v2071 = vunpack.c.h.b16 %v1958
        %v2072 = vunpack.c.l.b16 %v1959
        %v2073 = vunpack.c.h.b16 %v1959
        %v2074 = vunpack.c.l.b16 %v1960
        %v2075 = vunpack.c.h.b16 %v1960
        %v2076 = vunpack.c.l.b16 %v1961
        %v2077 = vunpack.c.h.b16 %v1961
        %v2078 = vunpack.c.l.b16 %v1962
        %v2079 = vunpack.c.h.b16 %v1962
        %v2080 = vunpack.c.l.b16 %v1963
        %v2081 = vunpack.c.h.b16 %v1963
        %v2082 = vunpack.c.l.b16 %v1964
        %v2083 = vunpack.c.h.b16 %v1964
        %v2084 = vunpack.c.l.b16 %v1965
        %v2085 = vunpack.c.h.b16 %v1965
        %v2086 = vunpack.c.l.b16 %v1966
        %v2087 = vunpack.c.h.b16 %v1966
        %v2088 = vunpack.c.l.b16 %v1967
        %v2089 = vunpack.c.h.b16 %v1967
        %v2090 = vunpack.c.l.b16 %v1968
        %v2091 = vunpack.c.h.b16 %v1968
        %v2092 = vunpack.c.l.b16 %v1969
        %v2093 = vunpack.c.h.b16 %v1969
        %v2094 = vunpack.c.l.b16 %v1970
        %v2095 = vunpack.c.h.b16 %v1970
        %v2096 = vunpack.c.l.b16 %v1971
        %v2097 = vunpack.c.h.b16 %v1971
        %v2098 = vunpack.c.l.b16 %v1972
        %v2099 = vunpack.c.h.b16 %v1972
        %v2100 = vunpack.c.l.b16 %v1973
        %v2101 = vunpack.c.h.b16 %v1973
        %v2102 = vpack.c.b16 %v2040, %v2038
        %v2103 = vpack.c.b16 %v2041, %v2039
        %v2104 = vpack.c.b16 %v2044, %v2042
        %v2105 = vpack.c.b16 %v2045, %v2043
        %v2106 = vpack.c.b16 %v2048, %v2046
        %v2107 = vpack.c.b16 %v2049, %v2047
        %v2108 = vpack.c.b16 %v2052, %v2050
        %v2109 = vpack.c.b16 %v2053, %v2051
        %v2110 = vpack.c.b16 %v2056, %v2054
        %v2111 = vpack.c.b16 %v2057, %v2055
        %v2112 = vpack.c.b16 %v2060, %v2058
        %v2113 = vpack.c.b16 %v2061, %v2059
        %v2114 = vpack.c.b16 %v2064, %v2062
        %v2115 = vpack.c.b16 %v2065, %v2063
        %v2116 = vpack.c.b16 %v2068, %v2066
        %v2117 = vpack.c.b16 %v2069, %v2067
        %v2118 = vpack.c.b16 %v2072, %v2070
        %v2119 = vpack.c.b16 %v2073, %v2071
        %v2120 = vpack.c.b16 %v2076, %v2074
        %v2121 = vpack.c.b16 %v2077, %v2075
        %v2122 = vpack.c.b16 %v2080, %v2078
        %v2123 = vpack.c.b16 %v2081, %v2079
        %v2124 = vpack.c.b16 %v2084, %v2082
        %v2125 = vpack.c.b16 %v2085, %v2083
        %v2126 = vpack.c.b16 %v2088, %v2086
        %v2127 = vpack.c.b16 %v2089, %v2087
        %v2128 = vpack.c.b16 %v2092, %v2090
        %v2129 = vpack.c.b16 %v2093, %v2091
        %v2130 = vpack.c.b16 %v2096, %v2094
        %v2131 = vpack.c.b16 %v2097, %v2095
        %v2132 = vpack.c.b16 %v2100, %v2098
        %v2133 = vpack.c.b16 %v2101, %v2099
        %2166 = vmatprep.subr.bf16.mxu0 %v2117
        %2167 = vmatpush1.bf16.msra.mxu0 %v2116
        %2168 = vmatprep.subr.bf16.mxu0 %v2115
        %2169 = vmatpush1.bf16.msra.mxu0 %v2114
        %2170 = vmatprep.subr.bf16.mxu0 %v2113
        %2171 = vmatpush1.bf16.msra.mxu0 %v2112
        %2172 = vmatprep.subr.bf16.mxu0 %v2111
        %2173 = vmatpush1.bf16.msra.mxu0 %v2110
        %2174 = vmatprep.subr.bf16.mxu0 %v2109
        %2175 = vmatpush1.bf16.msra.mxu0 %v2108
        %2176 = vmatprep.subr.bf16.mxu0 %v2107
        %2177 = vmatpush1.bf16.msra.mxu0 %v2106
        %2178 = vmatprep.subr.bf16.mxu0 %v2105
        %2179 = vmatpush1.bf16.msra.mxu0 %v2104
        %2180 = vmatprep.subr.bf16.mxu0 %v2103
        %2181 = vmatpush1.bf16.msra.mxu0 %v2102
        %2182 = vmatprep.subr.bf16.mxu0 %v2133
        %2183 = vmatpush2.bf16.msra.mxu0 %v2132
        %2184 = vmatprep.subr.bf16.mxu0 %v2131
        %2185 = vmatpush2.bf16.msra.mxu0 %v2130
        %2186 = vmatprep.subr.bf16.mxu0 %v2129
        %2187 = vmatpush2.bf16.msra.mxu0 %v2128
        %2188 = vmatprep.subr.bf16.mxu0 %v2127
        %2189 = vmatpush2.bf16.msra.mxu0 %v2126
        %2190 = vmatprep.subr.bf16.mxu0 %v2125
        %2191 = vmatpush2.bf16.msra.mxu0 %v2124
        %2192 = vmatprep.subr.bf16.mxu0 %v2123
        %2193 = vmatpush2.bf16.msra.mxu0 %v2122
        %2194 = vmatprep.subr.bf16.mxu0 %v2121
        %2195 = vmatpush2.bf16.msra.mxu0 %v2120
        %2196 = vmatprep.subr.bf16.mxu0 %v2119
        %2197 = vmatpush2.bf16.msra.mxu0 %v2118
        %2198 = vmatprep.mubr.bf16.mxu0 %v1999
        %2199 = vmatmul.mubr.bf16.gmra.mxu0 %v1998
        %v2200 = vpop.f32.mrf.mxu0
        %v2201 = vadd.f32 %v1979, %v2200
        %v2202 = vpop.f32.mrf.mxu0
        %v2203 = vadd.f32 %v1983, %v2202
        %v2204 = vpop.f32.mrf.mxu0
        %v2205 = vadd.f32 %v1979, %v2204
        %v2206 = vpop.f32.mrf.mxu0
        %v2207 = vadd.f32 %v1983, %v2206
        %2208 = vmatprep.mubr.bf16.mxu0 %v2001
        %2209 = vmatmul.mubr.bf16.gmra.mxu0 %v2000
        %v2210 = vpop.f32.mrf.mxu0
        %v2211 = vadd.f32 %v1979, %v2210
        %v2212 = vpop.f32.mrf.mxu0
        %v2213 = vadd.f32 %v1983, %v2212
        %v2214 = vpop.f32.mrf.mxu0
        %v2215 = vadd.f32 %v1979, %v2214
        %v2216 = vpop.f32.mrf.mxu0
        %v2217 = vadd.f32 %v1983, %v2216
        %2218 = vdwg.mxu0
        %2219 = vst [vmem:[%s323] sm:$0xff] %v2201
        %2220 = vst [vmem:[%s323 + $0x8] sm:$0xff] %v2203
        %2221 = vst [vmem:[%s323 + $0x10] sm:$0xff] %v2205
        %2222 = vst [vmem:[%s323 + $0x18] sm:$0xff] %v2207
        %2223 = vst [vmem:[%s323 + $0x20] sm:$0xff] %v2211
        %2224 = vst [vmem:[%s323 + $0x28] sm:$0xff] %v2213
        %2225 = vst [vmem:[%s323 + $0x30] sm:$0xff] %v2215
        %2226 = vst [vmem:[%s323 + $0x38] sm:$0xff] %v2217
        %s2227 = sand.u32 %s171, 1
        %s2228 = scalar_lea.sflag [#allocation5], %s2227
        %s2229 = sand.u32 %s171, 1
        %s2230 = smul.addr %s2229, 64
        %s2231 = scalar_lea.vmem [#allocation11], %s2230
        // Predicated region
        $region57: #{tpu_custom_call.1} parent=39 // pred_check
          %p2232 = pneg %p181
        $region58: #{tpu_custom_call.1} parent=39 // pred_check_branch
          %2234 = sbr.rel (%p2232) target = $region60
        $region59: #{tpu_custom_call.1} parent=39 // pred_region
          %s2236 = ssub.s32 1024, 1024
          %2237 = vsyncadd %s2228, %s2236
          %s2238 = smul.addr %s28, 8
          %s2239 = smul.addr %s29, 8
          %s2240 = sadd.s32 %s2238, %s2239
          %s2241 = smul.addr %s2240, 128
          %s2242 = scalar_lea.hbm %s5, %s2241
          %s2243 = sshll.u32 %s2231, 4
          %s2244 = int_to_ptr.vmem [resolvable:$true] %s2243
          %2249 = dma.vmem_to_hbm [thread:$0]  %s2244, 1024, %s2242, %s2228, 256, 256, 16
        $region60: #{tpu_custom_call.1} parent=39 // pred_fallthru
          _
      $region40: #{tpu_custom_call.1} parent=5 // pred_fallthru
        _
      %p2250 = scmp.le.s32.totalorder 2, %s19
      // Predicated region
      $region61: #{tpu_custom_call.1} parent=5 // pred_check
        %p2251 = pneg %p2250
      $region62: #{tpu_custom_call.1} parent=5 // pred_check_branch
        %2253 = sbr.rel (%p2251) target = $region64
      $region63: #{tpu_custom_call.1} parent=5 // pred_region
        %s2254 = ssub.s32 %s19, 2
        // Predicated region
        $region65: #{tpu_custom_call.1} parent=63 // pred_check
          %p2255 = pneg %p187
        $region66: #{tpu_custom_call.1} parent=63 // pred_check_branch
          %2257 = sbr.rel (%p2255) target = $region68
        $region67: #{tpu_custom_call.1} parent=63 // pred_region
          %s2258 = sand.u32 %s172, 1
          %s2259 = scalar_lea.sflag [#allocation5], %s2258
          %s2260 = sand.u32 %s172, 1
          %s2261 = smul.addr %s2260, 64
          %s2262 = scalar_lea.vmem [#allocation11], %s2261
          %2263 = dma.done %s2259, 1024
        $region68: #{tpu_custom_call.1} parent=63 // pred_fallthru
          _
      $region64: #{tpu_custom_call.1} parent=5 // pred_fallthru
        _
    $region6: #{tpu_custom_call.1} parent=1 // loop_footer
      %s23 = sadd.s32 1, %s19
    $region7: #{tpu_custom_call.1} parent=1 // loop_footer_branch
      %18 = sbr.rel target = $region3
    $region8: #{tpu_custom_call.1} parent=1 // loop_exit
      _
    %2264 = vsyncpa [#allocation4], 1
    %s2265 = scalar_lea.sflag [#allocation4], 1
    %2266 = vsyncpa %s2265, 1
    %2267 = vsyncpa [#allocation7], 1
    %2268 = vsyncpa [#allocation10], 1
    %2269 = vsyncpa [#allocation5], 1
    %s2270 = scalar_lea.sflag [#allocation5], 1
    %2271 = vsyncpa %s2270, 1

</llo_original>
